<compile_context>
chip_gen: v7x
topology: tpu7x:2x2x1
jax: 0.10.0
libtpu: 0.0.40
codegen_flags: <defaults>
</compile_context>

<pallas_src>
import functools

import numpy as np
import jax
import jax.numpy as jnp
from jax.experimental import pallas as pl
from jax.experimental.pallas import tpu as pltpu

EPS = 1e-5  # nn.InstanceNorm2d default eps


# --------------------------------------------------------------------------- helpers

def _lane_roll(x, shift):
    """result[..., i] = x[..., (i - shift) % S]  (jnp.roll semantics, static shift)."""
    S = x.shape[-1]
    shift = int(shift) % S
    if shift == 0:
        return x
    return jnp.concatenate([x[..., S - shift:], x[..., :S - shift]], axis=-1)


def _and(m1, m2):
    if m1 is None:
        return m2
    if m2 is None:
        return m1
    return m1 & m2


def _in_prelu(y, gamma, beta, alpha, valid_mask=None, n_valid=None):
    """InstanceNorm2d(affine) + PReLU over the lane (flattened spatial) axis.

    y: (C, S) f32 for one instance; gamma/beta/alpha: (C, 1).
    If valid_mask is given, the statistics use only the masked columns (n_valid of them).
    """
    if valid_mask is None:
        mean = jnp.mean(y, axis=1, keepdims=True)
        var = jnp.mean(jnp.square(y - mean), axis=1, keepdims=True)   # biased, like torch
    else:
        inv_n = 1.0 / float(n_valid)
        mean = jnp.sum(jnp.where(valid_mask, y, 0.0), axis=1, keepdims=True) * inv_n
        d = jnp.where(valid_mask, y - mean, 0.0)
        var = jnp.sum(d * d, axis=1, keepdims=True) * inv_n
    yn = (y - mean) * jax.lax.rsqrt(var + EPS)
    yn = yn * gamma + beta
    return jnp.where(yn >= 0.0, yn, alpha * yn)


# --------------------------------------------------------------------- fused kernel

def _dense_encoder_kernel(x_ref, w1_ref, dw0_ref, dw1_ref, dw2_ref, dw3_ref,
                          w2_ref, aff_ref, o_ref, *, T, F):
    S = T * F
    col = jax.lax.broadcasted_iota(jnp.int32, (1, S), 1)      # flattened spatial index
    f_idx = col % F                                           # frequency index per column
    # frequency-pad validity masks for the 3 kf taps of a width-3, pad-(1,1) conv
    m_kf = (f_idx >= 1, None, f_idx <= F - 2)

    def mxu(w_ref_, rhs):
        # bf16 MXU inputs, f32 accumulation (no Precision.HIGHEST multi-pass emulation).
        return jnp.dot(w_ref_[...], rhs.astype(jnp.bfloat16),
                       preferred_element_type=jnp.float32)

    def affine(stage):
        a = aff_ref[stage]                                    # (C, 3) = [gamma, beta, alpha]
        return a[:, 0:1], a[:, 1:2], a[:, 2:3]

    def taps_2x3(a, dil):
        """Six shifted+masked copies of a (C, S) activation: the (2,3) causal dilated taps."""
        taps = []
        for kt in range(2):
            dt = (1 - kt) * dil                               # causal shift (rows of time)
            if dt >= T:                                       # tap lies entirely in the pad
                taps.extend([jnp.zeros_like(a)] * 3)
                continue
            m_t = (col >= dt * F) if dt > 0 else None
            for kf in range(3):
                r = _lane_roll(a, dt * F - (kf - 1))
                m = _and(m_t, m_kf[kf])
                taps.append(r if m is None else jnp.where(m, r, 0.0))
        return taps

    dw_refs = (dw0_ref, dw1_ref, dw2_ref, dw3_ref)

    # ---- dense_conv_1: 1x1 conv (pure channel matmul) + InstanceNorm + PReLU --------
    act = _in_prelu(mxu(w1_ref, x_ref[0]), *affine(0))        # (C, S)
    skips = [act]         # most-recent-first == torch.cat([x, skip], dim=1) ordering

    # ---- DenseBlock: 4 causal dilated (2,3) convs; skips never leave VMEM -----------
    for i in range(4):
        dil = 2 ** i
        taps = []
        for seg in skips:                                     # channel segments, skip order
            taps.extend(taps_2x3(seg, dil))
        stacked = jnp.concatenate(taps, axis=0)               # (6*(i+1)*C, S)
        act = _in_prelu(mxu(dw_refs[i], stacked), *affine(1 + i))
        skips.insert(0, act)

    # ---- dense_conv_2: (1,3) conv computed at stride 1 ("wide") in-kernel -----------
    a = skips[0]
    taps = []
    for kf in range(3):
        r = _lane_roll(a, -(kf - 1))
        taps.append(r if m_kf[kf] is None else jnp.where(m_kf[kf], r, 0.0))
    y = mxu(w2_ref, jnp.concatenate(taps, axis=0))            # (C, S)
    keep = (f_idx % 2) == 0                                   # columns surviving stride 2
    out = _in_prelu(y, *affine(5), valid_mask=keep, n_valid=T * ((F + 1) // 2))
    o_ref[0] = out                                            # lane-dense (C, 128) store


# ------------------------------------------------------------------------ wrapper

def dense_encoder_forward(x, p):
    """Fused DenseEncoder forward.  x: (B, in_channel, T, F) NCHW, like PyTorch.

    Returns (B, dense_channel, T, ceil(F/2)) NCHW.
    """
    B, Cin, T, F = x.shape
    C = p["w1"].shape[0]
    S = T * F
    bf16 = jnp.bfloat16

    # ---- parameter / input repacking (free layout plumbing, outside the kernel) ----
    x_flat = x.reshape(B, Cin, S).astype(bf16)
    w1 = p["w1"][:, :, 0, 0].astype(bf16)                                   # (C, Cin)
    dws = []
    for i in range(4):
        wt = p[f"dw{i}"]                                                    # (C, C*(i+1), 2, 3)
        w = wt.reshape(C, i + 1, C, 2, 3).transpose(0, 1, 3, 4, 2)          # (co, seg, kt, kf, c)
        dws.append(w.reshape(C, (i + 1) * 6 * C).astype(bf16))
    w2 = p["w2"][:, :, 0, :].transpose(0, 2, 1).reshape(C, 3 * C).astype(bf16)
    # Per-stage (gamma, beta, alpha).  Conv biases are dropped: a per-channel constant
    # added before InstanceNorm is exactly cancelled by the mean subtraction.
    aff = jnp.stack(
        [jnp.stack([p["g1"], p["bt1"], p["a1"]], axis=-1)]
        + [jnp.stack([p[f"dg{i}"], p[f"dbt{i}"], p[f"da{i}"]], axis=-1) for i in range(4)]
        + [jnp.stack([p["g2"], p["bt2"], p["a2"]], axis=-1)],
        axis=0).astype(jnp.float32)                                         # (6, C, 3)

    kernel = functools.partial(_dense_encoder_kernel, T=T, F=F)
    wide = pl.pallas_call(
        kernel,
        out_shape=jax.ShapeDtypeStruct((B, C, S), jnp.float32),
        grid=(B,),
        in_specs=[
            pl.BlockSpec((1, Cin, S), lambda b: (b, 0, 0)),                 # x (one batch elem)
            pl.BlockSpec((C, Cin), lambda b: (0, 0)),                       # dense_conv_1 weight
            pl.BlockSpec((C, 6 * C), lambda b: (0, 0)),                     # dense block weights
            pl.BlockSpec((C, 12 * C), lambda b: (0, 0)),
            pl.BlockSpec((C, 18 * C), lambda b: (0, 0)),
            pl.BlockSpec((C, 24 * C), lambda b: (0, 0)),
            pl.BlockSpec((C, 3 * C), lambda b: (0, 0)),                     # dense_conv_2 weight
            pl.BlockSpec((6, C, 3), lambda b: (0, 0, 0)),                   # gamma/beta/alpha
        ],
        out_specs=pl.BlockSpec((1, C, S), lambda b: (b, 0, 0)),
        compiler_params=pltpu.CompilerParams(dimension_semantics=("parallel",)),
    )(x_flat, w1, *dws, w2, aff)

    # stride-2 frequency subsample of the wide dense_conv_2 result (tiny XLA slice).
    return wide.reshape(B, C, T, F)[:, :, :, 0::2]


# ------------------------------------------------------------------- pure-JAX reference

def _conv_ref(x, w, b, stride=(1, 1), rhs_dilation=(1, 1)):
    y = jax.lax.conv_general_dilated(
        x, w, window_strides=stride, padding="VALID", rhs_dilation=rhs_dilation,
        dimension_numbers=("NCHW", "OIHW", "NCHW"),
        precision=jax.lax.Precision.HIGHEST)
    return y + b.reshape(1, -1, 1, 1)


def _in_prelu_ref(y, g, bt, a):
    mean = jnp.mean(y, axis=(2, 3), keepdims=True)
    var = jnp.mean(jnp.square(y - mean), axis=(2, 3), keepdims=True)
    yn = (y - mean) * jax.lax.rsqrt(var + EPS)
    yn = yn * g.reshape(1, -1, 1, 1) + bt.reshape(1, -1, 1, 1)
    return jnp.where(yn >= 0.0, yn, a.reshape(1, -1, 1, 1) * yn)


def dense_encoder_ref(x, p):
    x = _in_prelu_ref(_conv_ref(x, p["w1"], p["b1"]), p["g1"], p["bt1"], p["a1"])
    skip = x
    for i in range(4):
        dil = 2 ** i
        xp = jnp.pad(skip, ((0, 0), (0, 0), (dil, 0), (1, 1)))
        y = _conv_ref(xp, p[f"dw{i}"], p[f"db{i}"], rhs_dilation=(dil, 1))
        x = _in_prelu_ref(y, p[f"dg{i}"], p[f"dbt{i}"], p[f"da{i}"])
        skip = jnp.concatenate([x, skip], axis=1)
    xp = jnp.pad(x, ((0, 0), (0, 0), (0, 0), (1, 1)))
    y = _conv_ref(xp, p["w2"], p["b2"], stride=(1, 2))
    return _in_prelu_ref(y, p["g2"], p["bt2"], p["a2"])


# ------------------------------------------------------------------------------ main

if __name__ == "__main__":
    B, T, F_, IN_CH, C = 2, 8, 16, 2, 8   # h.dense_channel = 8, in_channel = 2

    key = jax.random.PRNGKey(0)
    keys = list(jax.random.split(key, 64))
    ki = iter(keys)

    def nrm(shape, scale=0.2):
        return scale * jax.random.normal(next(ki), shape, dtype=jnp.float32)

    params = {
        # dense_conv_1: Conv2d(in_ch, C, (1,1)) + IN(C, affine) + PReLU(C)
        "w1": nrm((C, IN_CH, 1, 1)), "b1": nrm((C,)),
        "g1": 1.0 + nrm((C,), 0.1), "bt1": nrm((C,), 0.1), "a1": 0.25 + nrm((C,), 0.05),
        # dense_conv_2: Conv2d(C, C, (1,3), stride (1,2), pad (0,1)) + IN + PReLU
        "w2": nrm((C, C, 1, 3)), "b2": nrm((C,)),
        "g2": 1.0 + nrm((C,), 0.1), "bt2": nrm((C,), 0.1), "a2": 0.25 + nrm((C,), 0.05),
    }
    # DenseBlock layer i: Conv2d(C*(i+1), C, (2,3), dilation (2^i, 1)) + IN + PReLU
    for i in range(4):
        params[f"dw{i}"] = nrm((C, C * (i + 1), 2, 3))
        params[f"db{i}"] = nrm((C,))
        params[f"dg{i}"] = 1.0 + nrm((C,), 0.1)
        params[f"dbt{i}"] = nrm((C,), 0.1)
        params[f"da{i}"] = 0.25 + nrm((C,), 0.05)

    # NCHW input, exactly like the PyTorch module: (B, in_channel, T, F)
    x = jax.random.normal(next(ki), (B, IN_CH, T, F_), dtype=jnp.float32)

    out = jax.block_until_ready(jax.jit(dense_encoder_forward)(x, params))
    ref = jax.block_until_ready(dense_encoder_ref(x, params))

    Wo = (F_ + 2 - 3) // 2 + 1
    assert out.shape == (B, C, T, Wo), out.shape
    # Kernel uses bf16 MXU inputs with f32 accumulation (per perf review); the f32
    # HIGHEST-precision reference therefore gets a correspondingly relaxed tolerance.
    np.testing.assert_allclose(np.asarray(out), np.asarray(ref), rtol=3e-2, atol=3e-2)
    print("KERNEL_OK")
</pallas_src>

<mosaic_0001>
module attributes {stable_mosaic.version = 11 : i64} {
  func.func @_dense_encoder_kernel(%arg0: i32, %arg1: memref<1x2x128xbf16, #tpu.memory_space<vmem>>, %arg2: memref<8x2xbf16, #tpu.memory_space<vmem>>, %arg3: memref<8x48xbf16, #tpu.memory_space<vmem>>, %arg4: memref<8x96xbf16, #tpu.memory_space<vmem>>, %arg5: memref<8x144xbf16, #tpu.memory_space<vmem>>, %arg6: memref<8x192xbf16, #tpu.memory_space<vmem>>, %arg7: memref<8x24xbf16, #tpu.memory_space<vmem>>, %arg8: memref<6x8x3xf32, #tpu.memory_space<vmem>>, %arg9: memref<1x8x128xf32, #tpu.memory_space<vmem>>) attributes {dimension_semantics = [#tpu.dimension_semantics<parallel>], iteration_bounds = array<i64: 2>, scalar_prefetch = 0 : i64, scratch_operands = 0 : i64, tpu.core_type = #tpu.core_type<tc>, window_params = [{transform_indices = @transform_0, window_bounds = array<i64: 1, 2, 128>}, {pipeline_mode = #tpu.pipeline_mode<synchronous>, transform_indices = @transform_1, window_bounds = array<i64: 8, 2>}, {pipeline_mode = #tpu.pipeline_mode<synchronous>, transform_indices = @transform_2, window_bounds = array<i64: 8, 48>}, {pipeline_mode = #tpu.pipeline_mode<synchronous>, transform_indices = @transform_3, window_bounds = array<i64: 8, 96>}, {pipeline_mode = #tpu.pipeline_mode<synchronous>, transform_indices = @transform_4, window_bounds = array<i64: 8, 144>}, {pipeline_mode = #tpu.pipeline_mode<synchronous>, transform_indices = @transform_5, window_bounds = array<i64: 8, 192>}, {pipeline_mode = #tpu.pipeline_mode<synchronous>, transform_indices = @transform_6, window_bounds = array<i64: 8, 24>}, {pipeline_mode = #tpu.pipeline_mode<synchronous>, transform_indices = @transform_7, window_bounds = array<i64: 6, 8, 3>}, {transform_indices = @transform_8, window_bounds = array<i64: 1, 8, 128>}]} {
    %0 = tpu.iota {dimensions = array<i32: 1>} : vector<1x128xi32>
    %c16_i32 = arith.constant 16 : i32
    %c0_i32 = arith.constant 0 : i32
    %1 = arith.cmpi eq, %c16_i32, %c0_i32 : i32
    %c1_i32 = arith.constant 1 : i32
    %2 = arith.select %1, %c1_i32, %c16_i32 : i32
    %3 = vector.broadcast %2 : i32 to vector<1x128xi32>
    %4 = arith.remsi %0, %3 : vector<1x128xi32>
    %c0_i32_0 = arith.constant 0 : i32
    %5 = vector.broadcast %c0_i32_0 : i32 to vector<1x128xi32>
    %6 = arith.cmpi ne, %4, %5 : vector<1x128xi32>
    %c0_i32_1 = arith.constant 0 : i32
    %7 = vector.broadcast %c0_i32_1 : i32 to vector<1x128xi32>
    %8 = arith.cmpi slt, %4, %7 : vector<1x128xi32>
    %c0_i32_2 = arith.constant 0 : i32
    %9 = arith.cmpi slt, %2, %c0_i32_2 : i32
    %10 = vector.broadcast %9 : i1 to vector<1x128xi1>
    %11 = vector.broadcast %10 : vector<1x128xi1> to vector<1x128xi1>
    %12 = arith.xori %8, %11 : vector<1x128xi1>
    %13 = arith.andi %12, %6 : vector<1x128xi1>
    %14 = vector.broadcast %2 : i32 to vector<1x128xi32>
    %15 = arith.addi %4, %14 : vector<1x128xi32>
    %16 = arith.select %13, %15, %4 : vector<1x128xi1>, vector<1x128xi32>
    %c1_i32_3 = arith.constant 1 : i32
    %17 = vector.broadcast %c1_i32_3 : i32 to vector<1x128xi32>
    %18 = arith.cmpi sge, %16, %17 : vector<1x128xi32>
    %c14_i32 = arith.constant 14 : i32
    %19 = vector.broadcast %c14_i32 : i32 to vector<1x128xi32>
    %20 = arith.cmpi sle, %16, %19 : vector<1x128xi32>
    %c0 = arith.constant 0 : index
    %c0_4 = arith.constant 0 : index
    %c0_5 = arith.constant 0 : index
    %21 = vector.load %arg1[%c0, %c0_4, %c0_5] : memref<1x2x128xbf16, #tpu.memory_space<vmem>>, vector<1x2x128xbf16>
    %22 = vector.shape_cast %21 : vector<1x2x128xbf16> to vector<2x128xbf16>
    %c0_6 = arith.constant 0 : index
    %c0_7 = arith.constant 0 : index
    %23 = vector.load %arg2[%c0_6, %c0_7] : memref<8x2xbf16, #tpu.memory_space<vmem>>, vector<8x2xbf16>
    %cst = arith.constant dense<0.000000e+00> : vector<8x128xf32>
    %24 = tpu.matmul %23, %22, %cst {dimension_numbers = #tpu.dot_dimension_numbers<[1], [0], [0], [1], [0, 0, 1, 1], [], []>} : vector<8x2xbf16>, vector<2x128xbf16>, vector<8x128xf32> -> vector<8x128xf32>
    %c0_8 = arith.constant 0 : index
    %c0_9 = arith.constant 0 : index
    %c0_10 = arith.constant 0 : index
    %25 = vector.load %arg8[%c0_8, %c0_9, %c0_10] : memref<6x8x3xf32, #tpu.memory_space<vmem>>, vector<1x8x3xf32>
    %26 = vector.shape_cast %25 : vector<1x8x3xf32> to vector<8x3xf32>
    %27 = vector.extract_strided_slice %26 {offsets = [0, 0], sizes = [8, 1], strides = [1, 1]} : vector<8x3xf32> to vector<8x1xf32>
    %28 = vector.extract_strided_slice %26 {offsets = [0, 1], sizes = [8, 1], strides = [1, 1]} : vector<8x3xf32> to vector<8x1xf32>
    %29 = vector.extract_strided_slice %26 {offsets = [0, 2], sizes = [8, 1], strides = [1, 1]} : vector<8x3xf32> to vector<8x1xf32>
    %cst_11 = arith.constant dense<0.000000e+00> : vector<8xf32>
    %30 = vector.multi_reduction <add>, %24, %cst_11 [1] : vector<8x128xf32> to vector<8xf32>
    %31 = vector.shape_cast %30 : vector<8xf32> to vector<8x1xf32>
    %cst_12 = arith.constant 1.280000e+02 : f32
    %32 = vector.broadcast %cst_12 : f32 to vector<8x1xf32>
    %33 = arith.divf %31, %32 : vector<8x1xf32>
    %34 = vector.broadcast %33 : vector<8x1xf32> to vector<8x128xf32>
    %35 = arith.subf %24, %34 : vector<8x128xf32>
    %36 = arith.mulf %35, %35 : vector<8x128xf32>
    %cst_13 = arith.constant dense<0.000000e+00> : vector<8xf32>
    %37 = vector.multi_reduction <add>, %36, %cst_13 [1] : vector<8x128xf32> to vector<8xf32>
    %38 = vector.shape_cast %37 : vector<8xf32> to vector<8x1xf32>
    %cst_14 = arith.constant 1.280000e+02 : f32
    %39 = vector.broadcast %cst_14 : f32 to vector<8x1xf32>
    %40 = arith.divf %38, %39 : vector<8x1xf32>
    %41 = vector.broadcast %33 : vector<8x1xf32> to vector<8x128xf32>
    %42 = arith.subf %24, %41 : vector<8x128xf32>
    %cst_15 = arith.constant 9.99999974E-6 : f32
    %43 = vector.broadcast %cst_15 : f32 to vector<8x1xf32>
    %44 = arith.addf %40, %43 : vector<8x1xf32>
    %45 = math.rsqrt %44 : vector<8x1xf32>
    %46 = vector.broadcast %45 : vector<8x1xf32> to vector<8x128xf32>
    %47 = arith.mulf %42, %46 : vector<8x128xf32>
    %48 = vector.broadcast %27 : vector<8x1xf32> to vector<8x128xf32>
    %49 = arith.mulf %47, %48 : vector<8x128xf32>
    %50 = vector.broadcast %28 : vector<8x1xf32> to vector<8x128xf32>
    %51 = arith.addf %49, %50 : vector<8x128xf32>
    %cst_16 = arith.constant 0.000000e+00 : f32
    %52 = vector.broadcast %cst_16 : f32 to vector<8x128xf32>
    %53 = arith.cmpf oge, %51, %52 : vector<8x128xf32>
    %54 = vector.broadcast %29 : vector<8x1xf32> to vector<8x128xf32>
    %55 = arith.mulf %54, %51 : vector<8x128xf32>
    %56 = arith.select %53, %51, %55 : vector<8x128xi1>, vector<8x128xf32>
    %c16_i32_17 = arith.constant 16 : i32
    %57 = vector.broadcast %c16_i32_17 : i32 to vector<1x128xi32>
    %58 = arith.cmpi sge, %0, %57 : vector<1x128xi32>
    %59 = vector.extract_strided_slice %56 {offsets = [0, 111], sizes = [8, 17], strides = [1, 1]} : vector<8x128xf32> to vector<8x17xf32>
    %60 = vector.extract_strided_slice %56 {offsets = [0, 0], sizes = [8, 111], strides = [1, 1]} : vector<8x128xf32> to vector<8x111xf32>
    %61 = tpu.concatenate %59, %60 in 1 : vector<8x17xf32>, vector<8x111xf32> -> vector<8x128xf32>
    %62 = arith.andi %58, %18 : vector<1x128xi1>
    %cst_18 = arith.constant 0.000000e+00 : f32
    %63 = vector.shape_cast %62 : vector<1x128xi1> to vector<1x128xi1>
    %64 = vector.broadcast %63 : vector<1x128xi1> to vector<8x128xi1>
    %65 = vector.broadcast %cst_18 : f32 to vector<8x128xf32>
    %66 = arith.select %64, %61, %65 : vector<8x128xi1>, vector<8x128xf32>
    %67 = vector.extract_strided_slice %56 {offsets = [0, 112], sizes = [8, 16], strides = [1, 1]} : vector<8x128xf32> to vector<8x16xf32>
    %68 = vector.extract_strided_slice %56 {offsets = [0, 0], sizes = [8, 112], strides = [1, 1]} : vector<8x128xf32> to vector<8x112xf32>
    %69 = tpu.concatenate %67, %68 in 1 : vector<8x16xf32>, vector<8x112xf32> -> vector<8x128xf32>
    %cst_19 = arith.constant 0.000000e+00 : f32
    %70 = vector.shape_cast %58 : vector<1x128xi1> to vector<1x128xi1>
    %71 = vector.broadcast %70 : vector<1x128xi1> to vector<8x128xi1>
    %72 = vector.broadcast %cst_19 : f32 to vector<8x128xf32>
    %73 = arith.select %71, %69, %72 : vector<8x128xi1>, vector<8x128xf32>
    %74 = vector.extract_strided_slice %56 {offsets = [0, 113], sizes = [8, 15], strides = [1, 1]} : vector<8x128xf32> to vector<8x15xf32>
    %75 = vector.extract_strided_slice %56 {offsets = [0, 0], sizes = [8, 113], strides = [1, 1]} : vector<8x128xf32> to vector<8x113xf32>
    %76 = tpu.concatenate %74, %75 in 1 : vector<8x15xf32>, vector<8x113xf32> -> vector<8x128xf32>
    %77 = arith.andi %58, %20 : vector<1x128xi1>
    %cst_20 = arith.constant 0.000000e+00 : f32
    %78 = vector.shape_cast %77 : vector<1x128xi1> to vector<1x128xi1>
    %79 = vector.broadcast %78 : vector<1x128xi1> to vector<8x128xi1>
    %80 = vector.broadcast %cst_20 : f32 to vector<8x128xf32>
    %81 = arith.select %79, %76, %80 : vector<8x128xi1>, vector<8x128xf32>
    %82 = vector.extract_strided_slice %56 {offsets = [0, 127], sizes = [8, 1], strides = [1, 1]} : vector<8x128xf32> to vector<8x1xf32>
    %83 = vector.extract_strided_slice %56 {offsets = [0, 0], sizes = [8, 127], strides = [1, 1]} : vector<8x128xf32> to vector<8x127xf32>
    %84 = tpu.concatenate %82, %83 in 1 : vector<8x1xf32>, vector<8x127xf32> -> vector<8x128xf32>
    %cst_21 = arith.constant 0.000000e+00 : f32
    %85 = vector.shape_cast %18 : vector<1x128xi1> to vector<1x128xi1>
    %86 = vector.broadcast %85 : vector<1x128xi1> to vector<8x128xi1>
    %87 = vector.broadcast %cst_21 : f32 to vector<8x128xf32>
    %88 = arith.select %86, %84, %87 : vector<8x128xi1>, vector<8x128xf32>
    %89 = vector.extract_strided_slice %56 {offsets = [0, 1], sizes = [8, 127], strides = [1, 1]} : vector<8x128xf32> to vector<8x127xf32>
    %90 = vector.extract_strided_slice %56 {offsets = [0, 0], sizes = [8, 1], strides = [1, 1]} : vector<8x128xf32> to vector<8x1xf32>
    %91 = tpu.concatenate %89, %90 in 1 : vector<8x127xf32>, vector<8x1xf32> -> vector<8x128xf32>
    %cst_22 = arith.constant 0.000000e+00 : f32
    %92 = vector.shape_cast %20 : vector<1x128xi1> to vector<1x128xi1>
    %93 = vector.broadcast %92 : vector<1x128xi1> to vector<8x128xi1>
    %94 = vector.broadcast %cst_22 : f32 to vector<8x128xf32>
    %95 = arith.select %93, %91, %94 : vector<8x128xi1>, vector<8x128xf32>
    %96 = tpu.concatenate %66, %73, %81, %88, %56, %95 in 0 : vector<8x128xf32>, vector<8x128xf32>, vector<8x128xf32>, vector<8x128xf32>, vector<8x128xf32>, vector<8x128xf32> -> vector<48x128xf32>
    %c0_23 = arith.constant 0 : index
    %c0_24 = arith.constant 0 : index
    %97 = vector.load %arg3[%c0_23, %c0_24] : memref<8x48xbf16, #tpu.memory_space<vmem>>, vector<8x48xbf16>
    %98 = arith.truncf %96 : vector<48x128xf32> to vector<48x128xbf16>
    %cst_25 = arith.constant dense<0.000000e+00> : vector<8x128xf32>
    %99 = tpu.matmul %97, %98, %cst_25 {dimension_numbers = #tpu.dot_dimension_numbers<[1], [0], [0], [1], [0, 0, 1, 1], [], []>} : vector<8x48xbf16>, vector<48x128xbf16>, vector<8x128xf32> -> vector<8x128xf32>
    %c1 = arith.constant 1 : index
    %c0_26 = arith.constant 0 : index
    %c0_27 = arith.constant 0 : index
    %100 = vector.load %arg8[%c1, %c0_26, %c0_27] : memref<6x8x3xf32, #tpu.memory_space<vmem>>, vector<1x8x3xf32>
    %101 = vector.shape_cast %100 : vector<1x8x3xf32> to vector<8x3xf32>
    %102 = vector.extract_strided_slice %101 {offsets = [0, 0], sizes = [8, 1], strides = [1, 1]} : vector<8x3xf32> to vector<8x1xf32>
    %103 = vector.extract_strided_slice %101 {offsets = [0, 1], sizes = [8, 1], strides = [1, 1]} : vector<8x3xf32> to vector<8x1xf32>
    %104 = vector.extract_strided_slice %101 {offsets = [0, 2], sizes = [8, 1], strides = [1, 1]} : vector<8x3xf32> to vector<8x1xf32>
    %cst_28 = arith.constant dense<0.000000e+00> : vector<8xf32>
    %105 = vector.multi_reduction <add>, %99, %cst_28 [1] : vector<8x128xf32> to vector<8xf32>
    %106 = vector.shape_cast %105 : vector<8xf32> to vector<8x1xf32>
    %cst_29 = arith.constant 1.280000e+02 : f32
    %107 = vector.broadcast %cst_29 : f32 to vector<8x1xf32>
    %108 = arith.divf %106, %107 : vector<8x1xf32>
    %109 = vector.broadcast %108 : vector<8x1xf32> to vector<8x128xf32>
    %110 = arith.subf %99, %109 : vector<8x128xf32>
    %111 = arith.mulf %110, %110 : vector<8x128xf32>
    %cst_30 = arith.constant dense<0.000000e+00> : vector<8xf32>
    %112 = vector.multi_reduction <add>, %111, %cst_30 [1] : vector<8x128xf32> to vector<8xf32>
    %113 = vector.shape_cast %112 : vector<8xf32> to vector<8x1xf32>
    %cst_31 = arith.constant 1.280000e+02 : f32
    %114 = vector.broadcast %cst_31 : f32 to vector<8x1xf32>
    %115 = arith.divf %113, %114 : vector<8x1xf32>
    %116 = vector.broadcast %108 : vector<8x1xf32> to vector<8x128xf32>
    %117 = arith.subf %99, %116 : vector<8x128xf32>
    %cst_32 = arith.constant 9.99999974E-6 : f32
    %118 = vector.broadcast %cst_32 : f32 to vector<8x1xf32>
    %119 = arith.addf %115, %118 : vector<8x1xf32>
    %120 = math.rsqrt %119 : vector<8x1xf32>
    %121 = vector.broadcast %120 : vector<8x1xf32> to vector<8x128xf32>
    %122 = arith.mulf %117, %121 : vector<8x128xf32>
    %123 = vector.broadcast %102 : vector<8x1xf32> to vector<8x128xf32>
    %124 = arith.mulf %122, %123 : vector<8x128xf32>
    %125 = vector.broadcast %103 : vector<8x1xf32> to vector<8x128xf32>
    %126 = arith.addf %124, %125 : vector<8x128xf32>
    %cst_33 = arith.constant 0.000000e+00 : f32
    %127 = vector.broadcast %cst_33 : f32 to vector<8x128xf32>
    %128 = arith.cmpf oge, %126, %127 : vector<8x128xf32>
    %129 = vector.broadcast %104 : vector<8x1xf32> to vector<8x128xf32>
    %130 = arith.mulf %129, %126 : vector<8x128xf32>
    %131 = arith.select %128, %126, %130 : vector<8x128xi1>, vector<8x128xf32>
    %c32_i32 = arith.constant 32 : i32
    %132 = vector.broadcast %c32_i32 : i32 to vector<1x128xi32>
    %133 = arith.cmpi sge, %0, %132 : vector<1x128xi32>
    %134 = vector.extract_strided_slice %131 {offsets = [0, 95], sizes = [8, 33], strides = [1, 1]} : vector<8x128xf32> to vector<8x33xf32>
    %135 = vector.extract_strided_slice %131 {offsets = [0, 0], sizes = [8, 95], strides = [1, 1]} : vector<8x128xf32> to vector<8x95xf32>
    %136 = tpu.concatenate %134, %135 in 1 : vector<8x33xf32>, vector<8x95xf32> -> vector<8x128xf32>
    %137 = arith.andi %133, %18 : vector<1x128xi1>
    %cst_34 = arith.constant 0.000000e+00 : f32
    %138 = vector.shape_cast %137 : vector<1x128xi1> to vector<1x128xi1>
    %139 = vector.broadcast %138 : vector<1x128xi1> to vector<8x128xi1>
    %140 = vector.broadcast %cst_34 : f32 to vector<8x128xf32>
    %141 = arith.select %139, %136, %140 : vector<8x128xi1>, vector<8x128xf32>
    %142 = vector.extract_strided_slice %131 {offsets = [0, 96], sizes = [8, 32], strides = [1, 1]} : vector<8x128xf32> to vector<8x32xf32>
    %143 = vector.extract_strided_slice %131 {offsets = [0, 0], sizes = [8, 96], strides = [1, 1]} : vector<8x128xf32> to vector<8x96xf32>
    %144 = tpu.concatenate %142, %143 in 1 : vector<8x32xf32>, vector<8x96xf32> -> vector<8x128xf32>
    %cst_35 = arith.constant 0.000000e+00 : f32
    %145 = vector.shape_cast %133 : vector<1x128xi1> to vector<1x128xi1>
    %146 = vector.broadcast %145 : vector<1x128xi1> to vector<8x128xi1>
    %147 = vector.broadcast %cst_35 : f32 to vector<8x128xf32>
    %148 = arith.select %146, %144, %147 : vector<8x128xi1>, vector<8x128xf32>
    %149 = vector.extract_strided_slice %131 {offsets = [0, 97], sizes = [8, 31], strides = [1, 1]} : vector<8x128xf32> to vector<8x31xf32>
    %150 = vector.extract_strided_slice %131 {offsets = [0, 0], sizes = [8, 97], strides = [1, 1]} : vector<8x128xf32> to vector<8x97xf32>
    %151 = tpu.concatenate %149, %150 in 1 : vector<8x31xf32>, vector<8x97xf32> -> vector<8x128xf32>
    %152 = arith.andi %133, %20 : vector<1x128xi1>
    %cst_36 = arith.constant 0.000000e+00 : f32
    %153 = vector.shape_cast %152 : vector<1x128xi1> to vector<1x128xi1>
    %154 = vector.broadcast %153 : vector<1x128xi1> to vector<8x128xi1>
    %155 = vector.broadcast %cst_36 : f32 to vector<8x128xf32>
    %156 = arith.select %154, %151, %155 : vector<8x128xi1>, vector<8x128xf32>
    %157 = vector.extract_strided_slice %131 {offsets = [0, 127], sizes = [8, 1], strides = [1, 1]} : vector<8x128xf32> to vector<8x1xf32>
    %158 = vector.extract_strided_slice %131 {offsets = [0, 0], sizes = [8, 127], strides = [1, 1]} : vector<8x128xf32> to vector<8x127xf32>
    %159 = tpu.concatenate %157, %158 in 1 : vector<8x1xf32>, vector<8x127xf32> -> vector<8x128xf32>
    %cst_37 = arith.constant 0.000000e+00 : f32
    %160 = vector.shape_cast %18 : vector<1x128xi1> to vector<1x128xi1>
    %161 = vector.broadcast %160 : vector<1x128xi1> to vector<8x128xi1>
    %162 = vector.broadcast %cst_37 : f32 to vector<8x128xf32>
    %163 = arith.select %161, %159, %162 : vector<8x128xi1>, vector<8x128xf32>
    %164 = vector.extract_strided_slice %131 {offsets = [0, 1], sizes = [8, 127], strides = [1, 1]} : vector<8x128xf32> to vector<8x127xf32>
    %165 = vector.extract_strided_slice %131 {offsets = [0, 0], sizes = [8, 1], strides = [1, 1]} : vector<8x128xf32> to vector<8x1xf32>
    %166 = tpu.concatenate %164, %165 in 1 : vector<8x127xf32>, vector<8x1xf32> -> vector<8x128xf32>
    %cst_38 = arith.constant 0.000000e+00 : f32
    %167 = vector.shape_cast %20 : vector<1x128xi1> to vector<1x128xi1>
    %168 = vector.broadcast %167 : vector<1x128xi1> to vector<8x128xi1>
    %169 = vector.broadcast %cst_38 : f32 to vector<8x128xf32>
    %170 = arith.select %168, %166, %169 : vector<8x128xi1>, vector<8x128xf32>
    %c32_i32_39 = arith.constant 32 : i32
    %171 = vector.broadcast %c32_i32_39 : i32 to vector<1x128xi32>
    %172 = arith.cmpi sge, %0, %171 : vector<1x128xi32>
    %173 = vector.extract_strided_slice %56 {offsets = [0, 95], sizes = [8, 33], strides = [1, 1]} : vector<8x128xf32> to vector<8x33xf32>
    %174 = vector.extract_strided_slice %56 {offsets = [0, 0], sizes = [8, 95], strides = [1, 1]} : vector<8x128xf32> to vector<8x95xf32>
    %175 = tpu.concatenate %173, %174 in 1 : vector<8x33xf32>, vector<8x95xf32> -> vector<8x128xf32>
    %176 = arith.andi %172, %18 : vector<1x128xi1>
    %cst_40 = arith.constant 0.000000e+00 : f32
    %177 = vector.shape_cast %176 : vector<1x128xi1> to vector<1x128xi1>
    %178 = vector.broadcast %177 : vector<1x128xi1> to vector<8x128xi1>
    %179 = vector.broadcast %cst_40 : f32 to vector<8x128xf32>
    %180 = arith.select %178, %175, %179 : vector<8x128xi1>, vector<8x128xf32>
    %181 = vector.extract_strided_slice %56 {offsets = [0, 96], sizes = [8, 32], strides = [1, 1]} : vector<8x128xf32> to vector<8x32xf32>
    %182 = vector.extract_strided_slice %56 {offsets = [0, 0], sizes = [8, 96], strides = [1, 1]} : vector<8x128xf32> to vector<8x96xf32>
    %183 = tpu.concatenate %181, %182 in 1 : vector<8x32xf32>, vector<8x96xf32> -> vector<8x128xf32>
    %cst_41 = arith.constant 0.000000e+00 : f32
    %184 = vector.shape_cast %172 : vector<1x128xi1> to vector<1x128xi1>
    %185 = vector.broadcast %184 : vector<1x128xi1> to vector<8x128xi1>
    %186 = vector.broadcast %cst_41 : f32 to vector<8x128xf32>
    %187 = arith.select %185, %183, %186 : vector<8x128xi1>, vector<8x128xf32>
    %188 = vector.extract_strided_slice %56 {offsets = [0, 97], sizes = [8, 31], strides = [1, 1]} : vector<8x128xf32> to vector<8x31xf32>
    %189 = vector.extract_strided_slice %56 {offsets = [0, 0], sizes = [8, 97], strides = [1, 1]} : vector<8x128xf32> to vector<8x97xf32>
    %190 = tpu.concatenate %188, %189 in 1 : vector<8x31xf32>, vector<8x97xf32> -> vector<8x128xf32>
    %191 = arith.andi %172, %20 : vector<1x128xi1>
    %cst_42 = arith.constant 0.000000e+00 : f32
    %192 = vector.shape_cast %191 : vector<1x128xi1> to vector<1x128xi1>
    %193 = vector.broadcast %192 : vector<1x128xi1> to vector<8x128xi1>
    %194 = vector.broadcast %cst_42 : f32 to vector<8x128xf32>
    %195 = arith.select %193, %190, %194 : vector<8x128xi1>, vector<8x128xf32>
    %196 = vector.extract_strided_slice %56 {offsets = [0, 127], sizes = [8, 1], strides = [1, 1]} : vector<8x128xf32> to vector<8x1xf32>
    %197 = vector.extract_strided_slice %56 {offsets = [0, 0], sizes = [8, 127], strides = [1, 1]} : vector<8x128xf32> to vector<8x127xf32>
    %198 = tpu.concatenate %196, %197 in 1 : vector<8x1xf32>, vector<8x127xf32> -> vector<8x128xf32>
    %cst_43 = arith.constant 0.000000e+00 : f32
    %199 = vector.shape_cast %18 : vector<1x128xi1> to vector<1x128xi1>
    %200 = vector.broadcast %199 : vector<1x128xi1> to vector<8x128xi1>
    %201 = vector.broadcast %cst_43 : f32 to vector<8x128xf32>
    %202 = arith.select %200, %198, %201 : vector<8x128xi1>, vector<8x128xf32>
    %203 = vector.extract_strided_slice %56 {offsets = [0, 1], sizes = [8, 127], strides = [1, 1]} : vector<8x128xf32> to vector<8x127xf32>
    %204 = vector.extract_strided_slice %56 {offsets = [0, 0], sizes = [8, 1], strides = [1, 1]} : vector<8x128xf32> to vector<8x1xf32>
    %205 = tpu.concatenate %203, %204 in 1 : vector<8x127xf32>, vector<8x1xf32> -> vector<8x128xf32>
    %cst_44 = arith.constant 0.000000e+00 : f32
    %206 = vector.shape_cast %20 : vector<1x128xi1> to vector<1x128xi1>
    %207 = vector.broadcast %206 : vector<1x128xi1> to vector<8x128xi1>
    %208 = vector.broadcast %cst_44 : f32 to vector<8x128xf32>
    %209 = arith.select %207, %205, %208 : vector<8x128xi1>, vector<8x128xf32>
    %210 = tpu.concatenate %141, %148, %156, %163, %131, %170, %180, %187, %195, %202, %56, %209 in 0 : vector<8x128xf32>, vector<8x128xf32>, vector<8x128xf32>, vector<8x128xf32>, vector<8x128xf32>, vector<8x128xf32>, vector<8x128xf32>, vector<8x128xf32>, vector<8x128xf32>, vector<8x128xf32>, vector<8x128xf32>, vector<8x128xf32> -> vector<96x128xf32>
    %c0_45 = arith.constant 0 : index
    %c0_46 = arith.constant 0 : index
    %211 = vector.load %arg4[%c0_45, %c0_46] : memref<8x96xbf16, #tpu.memory_space<vmem>>, vector<8x96xbf16>
    %212 = arith.truncf %210 : vector<96x128xf32> to vector<96x128xbf16>
    %cst_47 = arith.constant dense<0.000000e+00> : vector<8x128xf32>
    %213 = tpu.matmul %211, %212, %cst_47 {dimension_numbers = #tpu.dot_dimension_numbers<[1], [0], [0], [1], [0, 0, 1, 1], [], []>} : vector<8x96xbf16>, vector<96x128xbf16>, vector<8x128xf32> -> vector<8x128xf32>
    %c2 = arith.constant 2 : index
    %c0_48 = arith.constant 0 : index
    %c0_49 = arith.constant 0 : index
    %214 = vector.load %arg8[%c2, %c0_48, %c0_49] : memref<6x8x3xf32, #tpu.memory_space<vmem>>, vector<1x8x3xf32>
    %215 = vector.shape_cast %214 : vector<1x8x3xf32> to vector<8x3xf32>
    %216 = vector.extract_strided_slice %215 {offsets = [0, 0], sizes = [8, 1], strides = [1, 1]} : vector<8x3xf32> to vector<8x1xf32>
    %217 = vector.extract_strided_slice %215 {offsets = [0, 1], sizes = [8, 1], strides = [1, 1]} : vector<8x3xf32> to vector<8x1xf32>
    %218 = vector.extract_strided_slice %215 {offsets = [0, 2], sizes = [8, 1], strides = [1, 1]} : vector<8x3xf32> to vector<8x1xf32>
    %cst_50 = arith.constant dense<0.000000e+00> : vector<8xf32>
    %219 = vector.multi_reduction <add>, %213, %cst_50 [1] : vector<8x128xf32> to vector<8xf32>
    %220 = vector.shape_cast %219 : vector<8xf32> to vector<8x1xf32>
    %cst_51 = arith.constant 1.280000e+02 : f32
    %221 = vector.broadcast %cst_51 : f32 to vector<8x1xf32>
    %222 = arith.divf %220, %221 : vector<8x1xf32>
    %223 = vector.broadcast %222 : vector<8x1xf32> to vector<8x128xf32>
    %224 = arith.subf %213, %223 : vector<8x128xf32>
    %225 = arith.mulf %224, %224 : vector<8x128xf32>
    %cst_52 = arith.constant dense<0.000000e+00> : vector<8xf32>
    %226 = vector.multi_reduction <add>, %225, %cst_52 [1] : vector<8x128xf32> to vector<8xf32>
    %227 = vector.shape_cast %226 : vector<8xf32> to vector<8x1xf32>
    %cst_53 = arith.constant 1.280000e+02 : f32
    %228 = vector.broadcast %cst_53 : f32 to vector<8x1xf32>
    %229 = arith.divf %227, %228 : vector<8x1xf32>
    %230 = vector.broadcast %222 : vector<8x1xf32> to vector<8x128xf32>
    %231 = arith.subf %213, %230 : vector<8x128xf32>
    %cst_54 = arith.constant 9.99999974E-6 : f32
    %232 = vector.broadcast %cst_54 : f32 to vector<8x1xf32>
    %233 = arith.addf %229, %232 : vector<8x1xf32>
    %234 = math.rsqrt %233 : vector<8x1xf32>
    %235 = vector.broadcast %234 : vector<8x1xf32> to vector<8x128xf32>
    %236 = arith.mulf %231, %235 : vector<8x128xf32>
    %237 = vector.broadcast %216 : vector<8x1xf32> to vector<8x128xf32>
    %238 = arith.mulf %236, %237 : vector<8x128xf32>
    %239 = vector.broadcast %217 : vector<8x1xf32> to vector<8x128xf32>
    %240 = arith.addf %238, %239 : vector<8x128xf32>
    %cst_55 = arith.constant 0.000000e+00 : f32
    %241 = vector.broadcast %cst_55 : f32 to vector<8x128xf32>
    %242 = arith.cmpf oge, %240, %241 : vector<8x128xf32>
    %243 = vector.broadcast %218 : vector<8x1xf32> to vector<8x128xf32>
    %244 = arith.mulf %243, %240 : vector<8x128xf32>
    %245 = arith.select %242, %240, %244 : vector<8x128xi1>, vector<8x128xf32>
    %c64_i32 = arith.constant 64 : i32
    %246 = vector.broadcast %c64_i32 : i32 to vector<1x128xi32>
    %247 = arith.cmpi sge, %0, %246 : vector<1x128xi32>
    %248 = vector.extract_strided_slice %245 {offsets = [0, 63], sizes = [8, 65], strides = [1, 1]} : vector<8x128xf32> to vector<8x65xf32>
    %249 = vector.extract_strided_slice %245 {offsets = [0, 0], sizes = [8, 63], strides = [1, 1]} : vector<8x128xf32> to vector<8x63xf32>
    %250 = tpu.concatenate %248, %249 in 1 : vector<8x65xf32>, vector<8x63xf32> -> vector<8x128xf32>
    %251 = arith.andi %247, %18 : vector<1x128xi1>
    %cst_56 = arith.constant 0.000000e+00 : f32
    %252 = vector.shape_cast %251 : vector<1x128xi1> to vector<1x128xi1>
    %253 = vector.broadcast %252 : vector<1x128xi1> to vector<8x128xi1>
    %254 = vector.broadcast %cst_56 : f32 to vector<8x128xf32>
    %255 = arith.select %253, %250, %254 : vector<8x128xi1>, vector<8x128xf32>
    %256 = vector.extract_strided_slice %245 {offsets = [0, 64], sizes = [8, 64], strides = [1, 1]} : vector<8x128xf32> to vector<8x64xf32>
    %257 = vector.extract_strided_slice %245 {offsets = [0, 0], sizes = [8, 64], strides = [1, 1]} : vector<8x128xf32> to vector<8x64xf32>
    %258 = tpu.concatenate %256, %257 in 1 : vector<8x64xf32>, vector<8x64xf32> -> vector<8x128xf32>
    %cst_57 = arith.constant 0.000000e+00 : f32
    %259 = vector.shape_cast %247 : vector<1x128xi1> to vector<1x128xi1>
    %260 = vector.broadcast %259 : vector<1x128xi1> to vector<8x128xi1>
    %261 = vector.broadcast %cst_57 : f32 to vector<8x128xf32>
    %262 = arith.select %260, %258, %261 : vector<8x128xi1>, vector<8x128xf32>
    %263 = vector.extract_strided_slice %245 {offsets = [0, 65], sizes = [8, 63], strides = [1, 1]} : vector<8x128xf32> to vector<8x63xf32>
    %264 = vector.extract_strided_slice %245 {offsets = [0, 0], sizes = [8, 65], strides = [1, 1]} : vector<8x128xf32> to vector<8x65xf32>
    %265 = tpu.concatenate %263, %264 in 1 : vector<8x63xf32>, vector<8x65xf32> -> vector<8x128xf32>
    %266 = arith.andi %247, %20 : vector<1x128xi1>
    %cst_58 = arith.constant 0.000000e+00 : f32
    %267 = vector.shape_cast %266 : vector<1x128xi1> to vector<1x128xi1>
    %268 = vector.broadcast %267 : vector<1x128xi1> to vector<8x128xi1>
    %269 = vector.broadcast %cst_58 : f32 to vector<8x128xf32>
    %270 = arith.select %268, %265, %269 : vector<8x128xi1>, vector<8x128xf32>
    %271 = vector.extract_strided_slice %245 {offsets = [0, 127], sizes = [8, 1], strides = [1, 1]} : vector<8x128xf32> to vector<8x1xf32>
    %272 = vector.extract_strided_slice %245 {offsets = [0, 0], sizes = [8, 127], strides = [1, 1]} : vector<8x128xf32> to vector<8x127xf32>
    %273 = tpu.concatenate %271, %272 in 1 : vector<8x1xf32>, vector<8x127xf32> -> vector<8x128xf32>
    %cst_59 = arith.constant 0.000000e+00 : f32
    %274 = vector.shape_cast %18 : vector<1x128xi1> to vector<1x128xi1>
    %275 = vector.broadcast %274 : vector<1x128xi1> to vector<8x128xi1>
    %276 = vector.broadcast %cst_59 : f32 to vector<8x128xf32>
    %277 = arith.select %275, %273, %276 : vector<8x128xi1>, vector<8x128xf32>
    %278 = vector.extract_strided_slice %245 {offsets = [0, 1], sizes = [8, 127], strides = [1, 1]} : vector<8x128xf32> to vector<8x127xf32>
    %279 = vector.extract_strided_slice %245 {offsets = [0, 0], sizes = [8, 1], strides = [1, 1]} : vector<8x128xf32> to vector<8x1xf32>
    %280 = tpu.concatenate %278, %279 in 1 : vector<8x127xf32>, vector<8x1xf32> -> vector<8x128xf32>
    %cst_60 = arith.constant 0.000000e+00 : f32
    %281 = vector.shape_cast %20 : vector<1x128xi1> to vector<1x128xi1>
    %282 = vector.broadcast %281 : vector<1x128xi1> to vector<8x128xi1>
    %283 = vector.broadcast %cst_60 : f32 to vector<8x128xf32>
    %284 = arith.select %282, %280, %283 : vector<8x128xi1>, vector<8x128xf32>
    %c64_i32_61 = arith.constant 64 : i32
    %285 = vector.broadcast %c64_i32_61 : i32 to vector<1x128xi32>
    %286 = arith.cmpi sge, %0, %285 : vector<1x128xi32>
    %287 = vector.extract_strided_slice %131 {offsets = [0, 63], sizes = [8, 65], strides = [1, 1]} : vector<8x128xf32> to vector<8x65xf32>
    %288 = vector.extract_strided_slice %131 {offsets = [0, 0], sizes = [8, 63], strides = [1, 1]} : vector<8x128xf32> to vector<8x63xf32>
    %289 = tpu.concatenate %287, %288 in 1 : vector<8x65xf32>, vector<8x63xf32> -> vector<8x128xf32>
    %290 = arith.andi %286, %18 : vector<1x128xi1>
    %cst_62 = arith.constant 0.000000e+00 : f32
    %291 = vector.shape_cast %290 : vector<1x128xi1> to vector<1x128xi1>
    %292 = vector.broadcast %291 : vector<1x128xi1> to vector<8x128xi1>
    %293 = vector.broadcast %cst_62 : f32 to vector<8x128xf32>
    %294 = arith.select %292, %289, %293 : vector<8x128xi1>, vector<8x128xf32>
    %295 = vector.extract_strided_slice %131 {offsets = [0, 64], sizes = [8, 64], strides = [1, 1]} : vector<8x128xf32> to vector<8x64xf32>
    %296 = vector.extract_strided_slice %131 {offsets = [0, 0], sizes = [8, 64], strides = [1, 1]} : vector<8x128xf32> to vector<8x64xf32>
    %297 = tpu.concatenate %295, %296 in 1 : vector<8x64xf32>, vector<8x64xf32> -> vector<8x128xf32>
    %cst_63 = arith.constant 0.000000e+00 : f32
    %298 = vector.shape_cast %286 : vector<1x128xi1> to vector<1x128xi1>
    %299 = vector.broadcast %298 : vector<1x128xi1> to vector<8x128xi1>
    %300 = vector.broadcast %cst_63 : f32 to vector<8x128xf32>
    %301 = arith.select %299, %297, %300 : vector<8x128xi1>, vector<8x128xf32>
    %302 = vector.extract_strided_slice %131 {offsets = [0, 65], sizes = [8, 63], strides = [1, 1]} : vector<8x128xf32> to vector<8x63xf32>
    %303 = vector.extract_strided_slice %131 {offsets = [0, 0], sizes = [8, 65], strides = [1, 1]} : vector<8x128xf32> to vector<8x65xf32>
    %304 = tpu.concatenate %302, %303 in 1 : vector<8x63xf32>, vector<8x65xf32> -> vector<8x128xf32>
    %305 = arith.andi %286, %20 : vector<1x128xi1>
    %cst_64 = arith.constant 0.000000e+00 : f32
    %306 = vector.shape_cast %305 : vector<1x128xi1> to vector<1x128xi1>
    %307 = vector.broadcast %306 : vector<1x128xi1> to vector<8x128xi1>
    %308 = vector.broadcast %cst_64 : f32 to vector<8x128xf32>
    %309 = arith.select %307, %304, %308 : vector<8x128xi1>, vector<8x128xf32>
    %310 = vector.extract_strided_slice %131 {offsets = [0, 127], sizes = [8, 1], strides = [1, 1]} : vector<8x128xf32> to vector<8x1xf32>
    %311 = vector.extract_strided_slice %131 {offsets = [0, 0], sizes = [8, 127], strides = [1, 1]} : vector<8x128xf32> to vector<8x127xf32>
    %312 = tpu.concatenate %310, %311 in 1 : vector<8x1xf32>, vector<8x127xf32> -> vector<8x128xf32>
    %cst_65 = arith.constant 0.000000e+00 : f32
    %313 = vector.shape_cast %18 : vector<1x128xi1> to vector<1x128xi1>
    %314 = vector.broadcast %313 : vector<1x128xi1> to vector<8x128xi1>
    %315 = vector.broadcast %cst_65 : f32 to vector<8x128xf32>
    %316 = arith.select %314, %312, %315 : vector<8x128xi1>, vector<8x128xf32>
    %317 = vector.extract_strided_slice %131 {offsets = [0, 1], sizes = [8, 127], strides = [1, 1]} : vector<8x128xf32> to vector<8x127xf32>
    %318 = vector.extract_strided_slice %131 {offsets = [0, 0], sizes = [8, 1], strides = [1, 1]} : vector<8x128xf32> to vector<8x1xf32>
    %319 = tpu.concatenate %317, %318 in 1 : vector<8x127xf32>, vector<8x1xf32> -> vector<8x128xf32>
    %cst_66 = arith.constant 0.000000e+00 : f32
    %320 = vector.shape_cast %20 : vector<1x128xi1> to vector<1x128xi1>
    %321 = vector.broadcast %320 : vector<1x128xi1> to vector<8x128xi1>
    %322 = vector.broadcast %cst_66 : f32 to vector<8x128xf32>
    %323 = arith.select %321, %319, %322 : vector<8x128xi1>, vector<8x128xf32>
    %c64_i32_67 = arith.constant 64 : i32
    %324 = vector.broadcast %c64_i32_67 : i32 to vector<1x128xi32>
    %325 = arith.cmpi sge, %0, %324 : vector<1x128xi32>
    %326 = vector.extract_strided_slice %56 {offsets = [0, 63], sizes = [8, 65], strides = [1, 1]} : vector<8x128xf32> to vector<8x65xf32>
    %327 = vector.extract_strided_slice %56 {offsets = [0, 0], sizes = [8, 63], strides = [1, 1]} : vector<8x128xf32> to vector<8x63xf32>
    %328 = tpu.concatenate %326, %327 in 1 : vector<8x65xf32>, vector<8x63xf32> -> vector<8x128xf32>
    %329 = arith.andi %325, %18 : vector<1x128xi1>
    %cst_68 = arith.constant 0.000000e+00 : f32
    %330 = vector.shape_cast %329 : vector<1x128xi1> to vector<1x128xi1>
    %331 = vector.broadcast %330 : vector<1x128xi1> to vector<8x128xi1>
    %332 = vector.broadcast %cst_68 : f32 to vector<8x128xf32>
    %333 = arith.select %331, %328, %332 : vector<8x128xi1>, vector<8x128xf32>
    %334 = vector.extract_strided_slice %56 {offsets = [0, 64], sizes = [8, 64], strides = [1, 1]} : vector<8x128xf32> to vector<8x64xf32>
    %335 = vector.extract_strided_slice %56 {offsets = [0, 0], sizes = [8, 64], strides = [1, 1]} : vector<8x128xf32> to vector<8x64xf32>
    %336 = tpu.concatenate %334, %335 in 1 : vector<8x64xf32>, vector<8x64xf32> -> vector<8x128xf32>
    %cst_69 = arith.constant 0.000000e+00 : f32
    %337 = vector.shape_cast %325 : vector<1x128xi1> to vector<1x128xi1>
    %338 = vector.broadcast %337 : vector<1x128xi1> to vector<8x128xi1>
    %339 = vector.broadcast %cst_69 : f32 to vector<8x128xf32>
    %340 = arith.select %338, %336, %339 : vector<8x128xi1>, vector<8x128xf32>
    %341 = vector.extract_strided_slice %56 {offsets = [0, 65], sizes = [8, 63], strides = [1, 1]} : vector<8x128xf32> to vector<8x63xf32>
    %342 = vector.extract_strided_slice %56 {offsets = [0, 0], sizes = [8, 65], strides = [1, 1]} : vector<8x128xf32> to vector<8x65xf32>
    %343 = tpu.concatenate %341, %342 in 1 : vector<8x63xf32>, vector<8x65xf32> -> vector<8x128xf32>
    %344 = arith.andi %325, %20 : vector<1x128xi1>
    %cst_70 = arith.constant 0.000000e+00 : f32
    %345 = vector.shape_cast %344 : vector<1x128xi1> to vector<1x128xi1>
    %346 = vector.broadcast %345 : vector<1x128xi1> to vector<8x128xi1>
    %347 = vector.broadcast %cst_70 : f32 to vector<8x128xf32>
    %348 = arith.select %346, %343, %347 : vector<8x128xi1>, vector<8x128xf32>
    %349 = vector.extract_strided_slice %56 {offsets = [0, 127], sizes = [8, 1], strides = [1, 1]} : vector<8x128xf32> to vector<8x1xf32>
    %350 = vector.extract_strided_slice %56 {offsets = [0, 0], sizes = [8, 127], strides = [1, 1]} : vector<8x128xf32> to vector<8x127xf32>
    %351 = tpu.concatenate %349, %350 in 1 : vector<8x1xf32>, vector<8x127xf32> -> vector<8x128xf32>
    %cst_71 = arith.constant 0.000000e+00 : f32
    %352 = vector.shape_cast %18 : vector<1x128xi1> to vector<1x128xi1>
    %353 = vector.broadcast %352 : vector<1x128xi1> to vector<8x128xi1>
    %354 = vector.broadcast %cst_71 : f32 to vector<8x128xf32>
    %355 = arith.select %353, %351, %354 : vector<8x128xi1>, vector<8x128xf32>
    %356 = vector.extract_strided_slice %56 {offsets = [0, 1], sizes = [8, 127], strides = [1, 1]} : vector<8x128xf32> to vector<8x127xf32>
    %357 = vector.extract_strided_slice %56 {offsets = [0, 0], sizes = [8, 1], strides = [1, 1]} : vector<8x128xf32> to vector<8x1xf32>
    %358 = tpu.concatenate %356, %357 in 1 : vector<8x127xf32>, vector<8x1xf32> -> vector<8x128xf32>
    %cst_72 = arith.constant 0.000000e+00 : f32
    %359 = vector.shape_cast %20 : vector<1x128xi1> to vector<1x128xi1>
    %360 = vector.broadcast %359 : vector<1x128xi1> to vector<8x128xi1>
    %361 = vector.broadcast %cst_72 : f32 to vector<8x128xf32>
    %362 = arith.select %360, %358, %361 : vector<8x128xi1>, vector<8x128xf32>
    %363 = tpu.concatenate %255, %262, %270, %277, %245, %284, %294, %301, %309, %316, %131, %323, %333, %340, %348, %355 in 0 : vector<8x128xf32>, vector<8x128xf32>, vector<8x128xf32>, vector<8x128xf32>, vector<8x128xf32>, vector<8x128xf32>, vector<8x128xf32>, vector<8x128xf32>, vector<8x128xf32>, vector<8x128xf32>, vector<8x128xf32>, vector<8x128xf32>, vector<8x128xf32>, vector<8x128xf32>, vector<8x128xf32>, vector<8x128xf32> -> vector<128x128xf32>
    %364 = tpu.concatenate %56, %362 in 0 : vector<8x128xf32>, vector<8x128xf32> -> vector<16x128xf32>
    %365 = tpu.concatenate %363, %364 in 0 : vector<128x128xf32>, vector<16x128xf32> -> vector<144x128xf32>
    %c0_73 = arith.constant 0 : index
    %c0_74 = arith.constant 0 : index
    %366 = vector.load %arg5[%c0_73, %c0_74] : memref<8x144xbf16, #tpu.memory_space<vmem>>, vector<8x144xbf16>
    %367 = arith.truncf %365 : vector<144x128xf32> to vector<144x128xbf16>
    %cst_75 = arith.constant dense<0.000000e+00> : vector<8x128xf32>
    %368 = tpu.matmul %366, %367, %cst_75 {dimension_numbers = #tpu.dot_dimension_numbers<[1], [0], [0], [1], [0, 0, 1, 1], [], []>} : vector<8x144xbf16>, vector<144x128xbf16>, vector<8x128xf32> -> vector<8x128xf32>
    %c3 = arith.constant 3 : index
    %c0_76 = arith.constant 0 : index
    %c0_77 = arith.constant 0 : index
    %369 = vector.load %arg8[%c3, %c0_76, %c0_77] : memref<6x8x3xf32, #tpu.memory_space<vmem>>, vector<1x8x3xf32>
    %370 = vector.shape_cast %369 : vector<1x8x3xf32> to vector<8x3xf32>
    %371 = vector.extract_strided_slice %370 {offsets = [0, 0], sizes = [8, 1], strides = [1, 1]} : vector<8x3xf32> to vector<8x1xf32>
    %372 = vector.extract_strided_slice %370 {offsets = [0, 1], sizes = [8, 1], strides = [1, 1]} : vector<8x3xf32> to vector<8x1xf32>
    %373 = vector.extract_strided_slice %370 {offsets = [0, 2], sizes = [8, 1], strides = [1, 1]} : vector<8x3xf32> to vector<8x1xf32>
    %cst_78 = arith.constant dense<0.000000e+00> : vector<8xf32>
    %374 = vector.multi_reduction <add>, %368, %cst_78 [1] : vector<8x128xf32> to vector<8xf32>
    %375 = vector.shape_cast %374 : vector<8xf32> to vector<8x1xf32>
    %cst_79 = arith.constant 1.280000e+02 : f32
    %376 = vector.broadcast %cst_79 : f32 to vector<8x1xf32>
    %377 = arith.divf %375, %376 : vector<8x1xf32>
    %378 = vector.broadcast %377 : vector<8x1xf32> to vector<8x128xf32>
    %379 = arith.subf %368, %378 : vector<8x128xf32>
    %380 = arith.mulf %379, %379 : vector<8x128xf32>
    %cst_80 = arith.constant dense<0.000000e+00> : vector<8xf32>
    %381 = vector.multi_reduction <add>, %380, %cst_80 [1] : vector<8x128xf32> to vector<8xf32>
    %382 = vector.shape_cast %381 : vector<8xf32> to vector<8x1xf32>
    %cst_81 = arith.constant 1.280000e+02 : f32
    %383 = vector.broadcast %cst_81 : f32 to vector<8x1xf32>
    %384 = arith.divf %382, %383 : vector<8x1xf32>
    %385 = vector.broadcast %377 : vector<8x1xf32> to vector<8x128xf32>
    %386 = arith.subf %368, %385 : vector<8x128xf32>
    %cst_82 = arith.constant 9.99999974E-6 : f32
    %387 = vector.broadcast %cst_82 : f32 to vector<8x1xf32>
    %388 = arith.addf %384, %387 : vector<8x1xf32>
    %389 = math.rsqrt %388 : vector<8x1xf32>
    %390 = vector.broadcast %389 : vector<8x1xf32> to vector<8x128xf32>
    %391 = arith.mulf %386, %390 : vector<8x128xf32>
    %392 = vector.broadcast %371 : vector<8x1xf32> to vector<8x128xf32>
    %393 = arith.mulf %391, %392 : vector<8x128xf32>
    %394 = vector.broadcast %372 : vector<8x1xf32> to vector<8x128xf32>
    %395 = arith.addf %393, %394 : vector<8x128xf32>
    %cst_83 = arith.constant 0.000000e+00 : f32
    %396 = vector.broadcast %cst_83 : f32 to vector<8x128xf32>
    %397 = arith.cmpf oge, %395, %396 : vector<8x128xf32>
    %398 = vector.broadcast %373 : vector<8x1xf32> to vector<8x128xf32>
    %399 = arith.mulf %398, %395 : vector<8x128xf32>
    %400 = arith.select %397, %395, %399 : vector<8x128xi1>, vector<8x128xf32>
    %cst_84 = arith.constant 0.000000e+00 : f32
    %401 = vector.broadcast %cst_84 : f32 to vector<8x128xf32>
    %402 = vector.extract_strided_slice %400 {offsets = [0, 127], sizes = [8, 1], strides = [1, 1]} : vector<8x128xf32> to vector<8x1xf32>
    %403 = vector.extract_strided_slice %400 {offsets = [0, 0], sizes = [8, 127], strides = [1, 1]} : vector<8x128xf32> to vector<8x127xf32>
    %404 = tpu.concatenate %402, %403 in 1 : vector<8x1xf32>, vector<8x127xf32> -> vector<8x128xf32>
    %cst_85 = arith.constant 0.000000e+00 : f32
    %405 = vector.shape_cast %18 : vector<1x128xi1> to vector<1x128xi1>
    %406 = vector.broadcast %405 : vector<1x128xi1> to vector<8x128xi1>
    %407 = vector.broadcast %cst_85 : f32 to vector<8x128xf32>
    %408 = arith.select %406, %404, %407 : vector<8x128xi1>, vector<8x128xf32>
    %409 = vector.extract_strided_slice %400 {offsets = [0, 1], sizes = [8, 127], strides = [1, 1]} : vector<8x128xf32> to vector<8x127xf32>
    %410 = vector.extract_strided_slice %400 {offsets = [0, 0], sizes = [8, 1], strides = [1, 1]} : vector<8x128xf32> to vector<8x1xf32>
    %411 = tpu.concatenate %409, %410 in 1 : vector<8x127xf32>, vector<8x1xf32> -> vector<8x128xf32>
    %cst_86 = arith.constant 0.000000e+00 : f32
    %412 = vector.shape_cast %20 : vector<1x128xi1> to vector<1x128xi1>
    %413 = vector.broadcast %412 : vector<1x128xi1> to vector<8x128xi1>
    %414 = vector.broadcast %cst_86 : f32 to vector<8x128xf32>
    %415 = arith.select %413, %411, %414 : vector<8x128xi1>, vector<8x128xf32>
    %cst_87 = arith.constant 0.000000e+00 : f32
    %416 = vector.broadcast %cst_87 : f32 to vector<8x128xf32>
    %417 = vector.extract_strided_slice %245 {offsets = [0, 127], sizes = [8, 1], strides = [1, 1]} : vector<8x128xf32> to vector<8x1xf32>
    %418 = vector.extract_strided_slice %245 {offsets = [0, 0], sizes = [8, 127], strides = [1, 1]} : vector<8x128xf32> to vector<8x127xf32>
    %419 = tpu.concatenate %417, %418 in 1 : vector<8x1xf32>, vector<8x127xf32> -> vector<8x128xf32>
    %cst_88 = arith.constant 0.000000e+00 : f32
    %420 = vector.shape_cast %18 : vector<1x128xi1> to vector<1x128xi1>
    %421 = vector.broadcast %420 : vector<1x128xi1> to vector<8x128xi1>
    %422 = vector.broadcast %cst_88 : f32 to vector<8x128xf32>
    %423 = arith.select %421, %419, %422 : vector<8x128xi1>, vector<8x128xf32>
    %424 = vector.extract_strided_slice %245 {offsets = [0, 1], sizes = [8, 127], strides = [1, 1]} : vector<8x128xf32> to vector<8x127xf32>
    %425 = vector.extract_strided_slice %245 {offsets = [0, 0], sizes = [8, 1], strides = [1, 1]} : vector<8x128xf32> to vector<8x1xf32>
    %426 = tpu.concatenate %424, %425 in 1 : vector<8x127xf32>, vector<8x1xf32> -> vector<8x128xf32>
    %cst_89 = arith.constant 0.000000e+00 : f32
    %427 = vector.shape_cast %20 : vector<1x128xi1> to vector<1x128xi1>
    %428 = vector.broadcast %427 : vector<1x128xi1> to vector<8x128xi1>
    %429 = vector.broadcast %cst_89 : f32 to vector<8x128xf32>
    %430 = arith.select %428, %426, %429 : vector<8x128xi1>, vector<8x128xf32>
    %cst_90 = arith.constant 0.000000e+00 : f32
    %431 = vector.broadcast %cst_90 : f32 to vector<8x128xf32>
    %432 = vector.extract_strided_slice %131 {offsets = [0, 127], sizes = [8, 1], strides = [1, 1]} : vector<8x128xf32> to vector<8x1xf32>
    %433 = vector.extract_strided_slice %131 {offsets = [0, 0], sizes = [8, 127], strides = [1, 1]} : vector<8x128xf32> to vector<8x127xf32>
    %434 = tpu.concatenate %432, %433 in 1 : vector<8x1xf32>, vector<8x127xf32> -> vector<8x128xf32>
    %cst_91 = arith.constant 0.000000e+00 : f32
    %435 = vector.shape_cast %18 : vector<1x128xi1> to vector<1x128xi1>
    %436 = vector.broadcast %435 : vector<1x128xi1> to vector<8x128xi1>
    %437 = vector.broadcast %cst_91 : f32 to vector<8x128xf32>
    %438 = arith.select %436, %434, %437 : vector<8x128xi1>, vector<8x128xf32>
    %439 = vector.extract_strided_slice %131 {offsets = [0, 1], sizes = [8, 127], strides = [1, 1]} : vector<8x128xf32> to vector<8x127xf32>
    %440 = vector.extract_strided_slice %131 {offsets = [0, 0], sizes = [8, 1], strides = [1, 1]} : vector<8x128xf32> to vector<8x1xf32>
    %441 = tpu.concatenate %439, %440 in 1 : vector<8x127xf32>, vector<8x1xf32> -> vector<8x128xf32>
    %cst_92 = arith.constant 0.000000e+00 : f32
    %442 = vector.shape_cast %20 : vector<1x128xi1> to vector<1x128xi1>
    %443 = vector.broadcast %442 : vector<1x128xi1> to vector<8x128xi1>
    %444 = vector.broadcast %cst_92 : f32 to vector<8x128xf32>
    %445 = arith.select %443, %441, %444 : vector<8x128xi1>, vector<8x128xf32>
    %cst_93 = arith.constant 0.000000e+00 : f32
    %446 = vector.broadcast %cst_93 : f32 to vector<8x128xf32>
    %447 = vector.extract_strided_slice %56 {offsets = [0, 127], sizes = [8, 1], strides = [1, 1]} : vector<8x128xf32> to vector<8x1xf32>
    %448 = vector.extract_strided_slice %56 {offsets = [0, 0], sizes = [8, 127], strides = [1, 1]} : vector<8x128xf32> to vector<8x127xf32>
    %449 = tpu.concatenate %447, %448 in 1 : vector<8x1xf32>, vector<8x127xf32> -> vector<8x128xf32>
    %cst_94 = arith.constant 0.000000e+00 : f32
    %450 = vector.shape_cast %18 : vector<1x128xi1> to vector<1x128xi1>
    %451 = vector.broadcast %450 : vector<1x128xi1> to vector<8x128xi1>
    %452 = vector.broadcast %cst_94 : f32 to vector<8x128xf32>
    %453 = arith.select %451, %449, %452 : vector<8x128xi1>, vector<8x128xf32>
    %454 = vector.extract_strided_slice %56 {offsets = [0, 1], sizes = [8, 127], strides = [1, 1]} : vector<8x128xf32> to vector<8x127xf32>
    %455 = vector.extract_strided_slice %56 {offsets = [0, 0], sizes = [8, 1], strides = [1, 1]} : vector<8x128xf32> to vector<8x1xf32>
    %456 = tpu.concatenate %454, %455 in 1 : vector<8x127xf32>, vector<8x1xf32> -> vector<8x128xf32>
    %cst_95 = arith.constant 0.000000e+00 : f32
    %457 = vector.shape_cast %20 : vector<1x128xi1> to vector<1x128xi1>
    %458 = vector.broadcast %457 : vector<1x128xi1> to vector<8x128xi1>
    %459 = vector.broadcast %cst_95 : f32 to vector<8x128xf32>
    %460 = arith.select %458, %456, %459 : vector<8x128xi1>, vector<8x128xf32>
    %461 = tpu.concatenate %401, %401, %401, %408, %400, %415, %416, %416, %416, %423, %245, %430, %431, %431, %431, %438 in 0 : vector<8x128xf32>, vector<8x128xf32>, vector<8x128xf32>, vector<8x128xf32>, vector<8x128xf32>, vector<8x128xf32>, vector<8x128xf32>, vector<8x128xf32>, vector<8x128xf32>, vector<8x128xf32>, vector<8x128xf32>, vector<8x128xf32>, vector<8x128xf32>, vector<8x128xf32>, vector<8x128xf32>, vector<8x128xf32> -> vector<128x128xf32>
    %462 = tpu.concatenate %131, %445, %446, %446, %446, %453, %56, %460 in 0 : vector<8x128xf32>, vector<8x128xf32>, vector<8x128xf32>, vector<8x128xf32>, vector<8x128xf32>, vector<8x128xf32>, vector<8x128xf32>, vector<8x128xf32> -> vector<64x128xf32>
    %463 = tpu.concatenate %461, %462 in 0 : vector<128x128xf32>, vector<64x128xf32> -> vector<192x128xf32>
    %c0_96 = arith.constant 0 : index
    %c0_97 = arith.constant 0 : index
    %464 = vector.load %arg6[%c0_96, %c0_97] : memref<8x192xbf16, #tpu.memory_space<vmem>>, vector<8x192xbf16>
    %465 = arith.truncf %463 : vector<192x128xf32> to vector<192x128xbf16>
    %cst_98 = arith.constant dense<0.000000e+00> : vector<8x128xf32>
    %466 = tpu.matmul %464, %465, %cst_98 {dimension_numbers = #tpu.dot_dimension_numbers<[1], [0], [0], [1], [0, 0, 1, 1], [], []>} : vector<8x192xbf16>, vector<192x128xbf16>, vector<8x128xf32> -> vector<8x128xf32>
    %c4 = arith.constant 4 : index
    %c0_99 = arith.constant 0 : index
    %c0_100 = arith.constant 0 : index
    %467 = vector.load %arg8[%c4, %c0_99, %c0_100] : memref<6x8x3xf32, #tpu.memory_space<vmem>>, vector<1x8x3xf32>
    %468 = vector.shape_cast %467 : vector<1x8x3xf32> to vector<8x3xf32>
    %469 = vector.extract_strided_slice %468 {offsets = [0, 0], sizes = [8, 1], strides = [1, 1]} : vector<8x3xf32> to vector<8x1xf32>
    %470 = vector.extract_strided_slice %468 {offsets = [0, 1], sizes = [8, 1], strides = [1, 1]} : vector<8x3xf32> to vector<8x1xf32>
    %471 = vector.extract_strided_slice %468 {offsets = [0, 2], sizes = [8, 1], strides = [1, 1]} : vector<8x3xf32> to vector<8x1xf32>
    %cst_101 = arith.constant dense<0.000000e+00> : vector<8xf32>
    %472 = vector.multi_reduction <add>, %466, %cst_101 [1] : vector<8x128xf32> to vector<8xf32>
    %473 = vector.shape_cast %472 : vector<8xf32> to vector<8x1xf32>
    %cst_102 = arith.constant 1.280000e+02 : f32
    %474 = vector.broadcast %cst_102 : f32 to vector<8x1xf32>
    %475 = arith.divf %473, %474 : vector<8x1xf32>
    %476 = vector.broadcast %475 : vector<8x1xf32> to vector<8x128xf32>
    %477 = arith.subf %466, %476 : vector<8x128xf32>
    %478 = arith.mulf %477, %477 : vector<8x128xf32>
    %cst_103 = arith.constant dense<0.000000e+00> : vector<8xf32>
    %479 = vector.multi_reduction <add>, %478, %cst_103 [1] : vector<8x128xf32> to vector<8xf32>
    %480 = vector.shape_cast %479 : vector<8xf32> to vector<8x1xf32>
    %cst_104 = arith.constant 1.280000e+02 : f32
    %481 = vector.broadcast %cst_104 : f32 to vector<8x1xf32>
    %482 = arith.divf %480, %481 : vector<8x1xf32>
    %483 = vector.broadcast %475 : vector<8x1xf32> to vector<8x128xf32>
    %484 = arith.subf %466, %483 : vector<8x128xf32>
    %cst_105 = arith.constant 9.99999974E-6 : f32
    %485 = vector.broadcast %cst_105 : f32 to vector<8x1xf32>
    %486 = arith.addf %482, %485 : vector<8x1xf32>
    %487 = math.rsqrt %486 : vector<8x1xf32>
    %488 = vector.broadcast %487 : vector<8x1xf32> to vector<8x128xf32>
    %489 = arith.mulf %484, %488 : vector<8x128xf32>
    %490 = vector.broadcast %469 : vector<8x1xf32> to vector<8x128xf32>
    %491 = arith.mulf %489, %490 : vector<8x128xf32>
    %492 = vector.broadcast %470 : vector<8x1xf32> to vector<8x128xf32>
    %493 = arith.addf %491, %492 : vector<8x128xf32>
    %cst_106 = arith.constant 0.000000e+00 : f32
    %494 = vector.broadcast %cst_106 : f32 to vector<8x128xf32>
    %495 = arith.cmpf oge, %493, %494 : vector<8x128xf32>
    %496 = vector.broadcast %471 : vector<8x1xf32> to vector<8x128xf32>
    %497 = arith.mulf %496, %493 : vector<8x128xf32>
    %498 = arith.select %495, %493, %497 : vector<8x128xi1>, vector<8x128xf32>
    %499 = vector.extract_strided_slice %498 {offsets = [0, 127], sizes = [8, 1], strides = [1, 1]} : vector<8x128xf32> to vector<8x1xf32>
    %500 = vector.extract_strided_slice %498 {offsets = [0, 0], sizes = [8, 127], strides = [1, 1]} : vector<8x128xf32> to vector<8x127xf32>
    %501 = tpu.concatenate %499, %500 in 1 : vector<8x1xf32>, vector<8x127xf32> -> vector<8x128xf32>
    %cst_107 = arith.constant 0.000000e+00 : f32
    %502 = vector.shape_cast %18 : vector<1x128xi1> to vector<1x128xi1>
    %503 = vector.broadcast %502 : vector<1x128xi1> to vector<8x128xi1>
    %504 = vector.broadcast %cst_107 : f32 to vector<8x128xf32>
    %505 = arith.select %503, %501, %504 : vector<8x128xi1>, vector<8x128xf32>
    %506 = vector.extract_strided_slice %498 {offsets = [0, 1], sizes = [8, 127], strides = [1, 1]} : vector<8x128xf32> to vector<8x127xf32>
    %507 = vector.extract_strided_slice %498 {offsets = [0, 0], sizes = [8, 1], strides = [1, 1]} : vector<8x128xf32> to vector<8x1xf32>
    %508 = tpu.concatenate %506, %507 in 1 : vector<8x127xf32>, vector<8x1xf32> -> vector<8x128xf32>
    %cst_108 = arith.constant 0.000000e+00 : f32
    %509 = vector.shape_cast %20 : vector<1x128xi1> to vector<1x128xi1>
    %510 = vector.broadcast %509 : vector<1x128xi1> to vector<8x128xi1>
    %511 = vector.broadcast %cst_108 : f32 to vector<8x128xf32>
    %512 = arith.select %510, %508, %511 : vector<8x128xi1>, vector<8x128xf32>
    %513 = tpu.concatenate %505, %498, %512 in 0 : vector<8x128xf32>, vector<8x128xf32>, vector<8x128xf32> -> vector<24x128xf32>
    %c0_109 = arith.constant 0 : index
    %c0_110 = arith.constant 0 : index
    %514 = vector.load %arg7[%c0_109, %c0_110] : memref<8x24xbf16, #tpu.memory_space<vmem>>, vector<8x24xbf16>
    %515 = arith.truncf %513 : vector<24x128xf32> to vector<24x128xbf16>
    %cst_111 = arith.constant dense<0.000000e+00> : vector<8x128xf32>
    %516 = tpu.matmul %514, %515, %cst_111 {dimension_numbers = #tpu.dot_dimension_numbers<[1], [0], [0], [1], [0, 0, 1, 1], [], []>} : vector<8x24xbf16>, vector<24x128xbf16>, vector<8x128xf32> -> vector<8x128xf32>
    %c2_i32 = arith.constant 2 : i32
    %c0_i32_112 = arith.constant 0 : i32
    %517 = arith.cmpi eq, %c2_i32, %c0_i32_112 : i32
    %c1_i32_113 = arith.constant 1 : i32
    %518 = arith.select %517, %c1_i32_113, %c2_i32 : i32
    %519 = vector.broadcast %518 : i32 to vector<1x128xi32>
    %520 = arith.remsi %16, %519 : vector<1x128xi32>
    %c0_i32_114 = arith.constant 0 : i32
    %521 = vector.broadcast %c0_i32_114 : i32 to vector<1x128xi32>
    %522 = arith.cmpi ne, %520, %521 : vector<1x128xi32>
    %c0_i32_115 = arith.constant 0 : i32
    %523 = vector.broadcast %c0_i32_115 : i32 to vector<1x128xi32>
    %524 = arith.cmpi slt, %520, %523 : vector<1x128xi32>
    %c0_i32_116 = arith.constant 0 : i32
    %525 = arith.cmpi slt, %518, %c0_i32_116 : i32
    %526 = vector.broadcast %525 : i1 to vector<1x128xi1>
    %527 = vector.broadcast %526 : vector<1x128xi1> to vector<1x128xi1>
    %528 = arith.xori %524, %527 : vector<1x128xi1>
    %529 = arith.andi %528, %522 : vector<1x128xi1>
    %530 = vector.broadcast %518 : i32 to vector<1x128xi32>
    %531 = arith.addi %520, %530 : vector<1x128xi32>
    %532 = arith.select %529, %531, %520 : vector<1x128xi1>, vector<1x128xi32>
    %c0_i32_117 = arith.constant 0 : i32
    %533 = vector.broadcast %c0_i32_117 : i32 to vector<1x128xi32>
    %534 = arith.cmpi eq, %532, %533 : vector<1x128xi32>
    %c5 = arith.constant 5 : index
    %c0_118 = arith.constant 0 : index
    %c0_119 = arith.constant 0 : index
    %535 = vector.load %arg8[%c5, %c0_118, %c0_119] : memref<6x8x3xf32, #tpu.memory_space<vmem>>, vector<1x8x3xf32>
    %536 = vector.shape_cast %535 : vector<1x8x3xf32> to vector<8x3xf32>
    %537 = vector.extract_strided_slice %536 {offsets = [0, 0], sizes = [8, 1], strides = [1, 1]} : vector<8x3xf32> to vector<8x1xf32>
    %538 = vector.extract_strided_slice %536 {offsets = [0, 1], sizes = [8, 1], strides = [1, 1]} : vector<8x3xf32> to vector<8x1xf32>
    %539 = vector.extract_strided_slice %536 {offsets = [0, 2], sizes = [8, 1], strides = [1, 1]} : vector<8x3xf32> to vector<8x1xf32>
    %cst_120 = arith.constant 0.000000e+00 : f32
    %540 = vector.shape_cast %534 : vector<1x128xi1> to vector<1x128xi1>
    %541 = vector.broadcast %540 : vector<1x128xi1> to vector<8x128xi1>
    %542 = vector.broadcast %cst_120 : f32 to vector<8x128xf32>
    %543 = arith.select %541, %516, %542 : vector<8x128xi1>, vector<8x128xf32>
    %cst_121 = arith.constant dense<0.000000e+00> : vector<8xf32>
    %544 = vector.multi_reduction <add>, %543, %cst_121 [1] : vector<8x128xf32> to vector<8xf32>
    %545 = vector.shape_cast %544 : vector<8xf32> to vector<8x1xf32>
    %cst_122 = arith.constant 1.562500e-02 : f32
    %546 = vector.broadcast %cst_122 : f32 to vector<8x1xf32>
    %547 = arith.mulf %545, %546 : vector<8x1xf32>
    %548 = vector.broadcast %547 : vector<8x1xf32> to vector<8x128xf32>
    %549 = arith.subf %516, %548 : vector<8x128xf32>
    %cst_123 = arith.constant 0.000000e+00 : f32
    %550 = vector.shape_cast %534 : vector<1x128xi1> to vector<1x128xi1>
    %551 = vector.broadcast %550 : vector<1x128xi1> to vector<8x128xi1>
    %552 = vector.broadcast %cst_123 : f32 to vector<8x128xf32>
    %553 = arith.select %551, %549, %552 : vector<8x128xi1>, vector<8x128xf32>
    %554 = arith.mulf %553, %553 : vector<8x128xf32>
    %cst_124 = arith.constant dense<0.000000e+00> : vector<8xf32>
    %555 = vector.multi_reduction <add>, %554, %cst_124 [1] : vector<8x128xf32> to vector<8xf32>
    %556 = vector.shape_cast %555 : vector<8xf32> to vector<8x1xf32>
    %cst_125 = arith.constant 1.562500e-02 : f32
    %557 = vector.broadcast %cst_125 : f32 to vector<8x1xf32>
    %558 = arith.mulf %556, %557 : vector<8x1xf32>
    %559 = vector.broadcast %547 : vector<8x1xf32> to vector<8x128xf32>
    %560 = arith.subf %516, %559 : vector<8x128xf32>
    %cst_126 = arith.constant 9.99999974E-6 : f32
    %561 = vector.broadcast %cst_126 : f32 to vector<8x1xf32>
    %562 = arith.addf %558, %561 : vector<8x1xf32>
    %563 = math.rsqrt %562 : vector<8x1xf32>
    %564 = vector.broadcast %563 : vector<8x1xf32> to vector<8x128xf32>
    %565 = arith.mulf %560, %564 : vector<8x128xf32>
    %566 = vector.broadcast %537 : vector<8x1xf32> to vector<8x128xf32>
    %567 = arith.mulf %565, %566 : vector<8x128xf32>
    %568 = vector.broadcast %538 : vector<8x1xf32> to vector<8x128xf32>
    %569 = arith.addf %567, %568 : vector<8x128xf32>
    %cst_127 = arith.constant 0.000000e+00 : f32
    %570 = vector.broadcast %cst_127 : f32 to vector<8x128xf32>
    %571 = arith.cmpf oge, %569, %570 : vector<8x128xf32>
    %572 = vector.broadcast %539 : vector<8x1xf32> to vector<8x128xf32>
    %573 = arith.mulf %572, %569 : vector<8x128xf32>
    %574 = arith.select %571, %569, %573 : vector<8x128xi1>, vector<8x128xf32>
    %c0_128 = arith.constant 0 : index
    %c0_129 = arith.constant 0 : index
    %c0_130 = arith.constant 0 : index
    %575 = vector.load %arg9[%c0_128, %c0_129, %c0_130] : memref<1x8x128xf32, #tpu.memory_space<vmem>>, vector<1x8x128xf32>
    %576 = vector.shape_cast %575 : vector<1x8x128xf32> to vector<8x128xf32>
    %577 = vector.shape_cast %574 : vector<8x128xf32> to vector<1x8x128xf32>
    tpu.vector_store %arg9[%c0_128, %c0_129, %c0_130], %577 {strides = array<i32>} : memref<1x8x128xf32, #tpu.memory_space<vmem>>, vector<1x8x128xf32>,
    return
  }
  func.func @transform_0(%arg0: i32) -> (i32, i32, i32) {
    %c0_i32 = arith.constant 0 : i32
    %c0_i32_0 = arith.constant 0 : i32
    %c0_i32_1 = arith.constant 0 : i32
    return %arg0, %c0_i32, %c0_i32_0 : i32, i32, i32
  }
  func.func @transform_1(%arg0: i32) -> (i32, i32) {
    %c0_i32 = arith.constant 0 : i32
    %c0_i32_0 = arith.constant 0 : i32
    %c0_i32_1 = arith.constant 0 : i32
    return %c0_i32, %c0_i32_0 : i32, i32
  }
  func.func @transform_2(%arg0: i32) -> (i32, i32) {
    %c0_i32 = arith.constant 0 : i32
    %c0_i32_0 = arith.constant 0 : i32
    %c0_i32_1 = arith.constant 0 : i32
    return %c0_i32, %c0_i32_0 : i32, i32
  }
  func.func @transform_3(%arg0: i32) -> (i32, i32) {
    %c0_i32 = arith.constant 0 : i32
    %c0_i32_0 = arith.constant 0 : i32
    %c0_i32_1 = arith.constant 0 : i32
    return %c0_i32, %c0_i32_0 : i32, i32
  }
  func.func @transform_4(%arg0: i32) -> (i32, i32) {
    %c0_i32 = arith.constant 0 : i32
    %c0_i32_0 = arith.constant 0 : i32
    %c0_i32_1 = arith.constant 0 : i32
    return %c0_i32, %c0_i32_0 : i32, i32
  }
  func.func @transform_5(%arg0: i32) -> (i32, i32) {
    %c0_i32 = arith.constant 0 : i32
    %c0_i32_0 = arith.constant 0 : i32
    %c0_i32_1 = arith.constant 0 : i32
    return %c0_i32, %c0_i32_0 : i32, i32
  }
  func.func @transform_6(%arg0: i32) -> (i32, i32) {
    %c0_i32 = arith.constant 0 : i32
    %c0_i32_0 = arith.constant 0 : i32
    %c0_i32_1 = arith.constant 0 : i32
    return %c0_i32, %c0_i32_0 : i32, i32
  }
  func.func @transform_7(%arg0: i32) -> (i32, i32, i32) {
    %c0_i32 = arith.constant 0 : i32
    %c0_i32_0 = arith.constant 0 : i32
    %c0_i32_1 = arith.constant 0 : i32
    %c0_i32_2 = arith.constant 0 : i32
    return %c0_i32, %c0_i32_0, %c0_i32_1 : i32, i32, i32
  }
  func.func @transform_8(%arg0: i32) -> (i32, i32, i32) {
    %c0_i32 = arith.constant 0 : i32
    %c0_i32_0 = arith.constant 0 : i32
    %c0_i32_1 = arith.constant 0 : i32
    return %arg0, %c0_i32, %c0_i32_0 : i32, i32, i32
  }
}

</mosaic_0001>

<llo_original>
// kernel: dense_encoder_forward.1
$region0: #{dense_encoder_forward.1}
  #allocation0 [shape = 'u32[]', space=smem, size = 0x4, offset = 0x4, fixed_abs, tag = 'smem constant byte address 0x4 - core index']
  #allocation1 [shape = 'u32[144,128]{1,0:T(1,128)}', space=vmem, size = 0x12000, scoped, tag = 'internal scratch']
  %s0 = inlined_call_operand.vmem [shape: bf16[2,2,128], index: 0, kind: input, shape index: {}]
  %s1 = inlined_call_operand.vmem [shape: bf16[8,2], index: 1, kind: input, shape index: {}]
  %s2 = inlined_call_operand.vmem [shape: bf16[8,48], index: 2, kind: input, shape index: {}]
  %s3 = inlined_call_operand.vmem [shape: bf16[8,96], index: 3, kind: input, shape index: {}]
  %s4 = inlined_call_operand.vmem [shape: bf16[8,144], index: 4, kind: input, shape index: {}]
  %s5 = inlined_call_operand.vmem [shape: bf16[8,192], index: 5, kind: input, shape index: {}]
  %s6 = inlined_call_operand.vmem [shape: bf16[8,24], index: 6, kind: input, shape index: {}]
  %s7 = inlined_call_operand.vmem [shape: f32[6,8,3], index: 7, kind: input, shape index: {}]
  %s8 = inlined_call_operand.vmem [shape: f32[2,8,128], index: 8, kind: output, shape index: {}]
  %s9 = sld [smem:[#allocation0]]
  $region65: #{dense_encoder_forward.1} parent=0
    _
  %s11 = ssub.s32 1, %s9
  %s12 = scalar_select 0, %s11, %s9
  loop: start=0, step=1, limit=4
  $region2: #{dense_encoder_forward.1} parent=0 // loop_pre_header
    _
  $region3: #{dense_encoder_forward.1} parent=0 // loop_header
    %s14 = sphi 0, %s18
    %p15 = scmp.ge.s32.totalorder %s14, 4
    %s24 = sphi 0, %s26
    %s27 = sphi 0, %s24
    %s28 = sphi 0, %s27
    %s44 = sphi 0, %s28
    %s48 = sphi 0, %s48
    %s50 = sphi 0, %s48
    %s51 = sphi 0, %s50
    %s65 = sphi 0, %s51
    %s69 = sphi 0, %s69
    %s71 = sphi 0, %s69
    %s72 = sphi 0, %s71
    %s86 = sphi 0, %s72
    %s90 = sphi 0, %s90
    %s92 = sphi 0, %s90
    %s93 = sphi 0, %s92
    %s107 = sphi 0, %s93
    %s111 = sphi 0, %s111
    %s113 = sphi 0, %s111
    %s114 = sphi 0, %s113
    %s128 = sphi 0, %s114
    %s132 = sphi 0, %s132
    %s134 = sphi 0, %s132
    %s135 = sphi 0, %s134
    %s149 = sphi 0, %s135
    %s153 = sphi 0, %s153
    %s155 = sphi 0, %s153
    %s156 = sphi 0, %s155
    %s170 = sphi 0, %s156
    %s174 = sphi 0, %s174
    %s176 = sphi 0, %s174
    %s177 = sphi 0, %s176
    %s191 = sphi 0, %s177
    %s197 = sphi 0, %s199
    %s200 = sphi 0, %s197
    %s201 = sphi 0, %s200
    %s217 = sphi 0, %s201
  $region4: #{dense_encoder_forward.1} parent=0 // loop_header_branch
    %17 = sbr.rel (%p15) target = $region8
  $region5: #{dense_encoder_forward.1} parent=0 // loop_body
    %s19 = ssub.s32 %s14, 1
    %s20 = ssub.s32 %s14, 2
    %s21 = sadd.s32 %s14, 1
    %s22 = ssub.s32 %s14, %s21
    %p23 = scmp.eq.s32.totalorder %s22, 0
    %s25 = sadd.s32 %s24, 1
    %s26 = scalar_select %p23, %s24, %s25
    %p29 = pneg %p23
    %p30 = scmp.eq.s32.totalorder %s14, 1
    %p31 = por %p29, %p30
    %p32 = scmp.ne.s32.totalorder %s24, %s27
    %p33 = scmp.eq.s32.totalorder %s14, 0
    %p34 = por %p32, %p33
    %p35 = scmp.ne.s32.totalorder %s24, %s27
    %p36 = scmp.eq.s32.totalorder %s19, 1
    %p37 = por %p35, %p36
    %p38 = scmp.ne.s32.totalorder %s27, %s28
    %p39 = scmp.eq.s32.totalorder %s19, 0
    %p40 = por %p38, %p39
    %p41 = scmp.ne.s32.totalorder %s27, %s28
    %p42 = scmp.eq.s32.totalorder %s20, 1
    %p43 = por %p41, %p42
    %p45 = scmp.ne.s32.totalorder %s28, %s44
    %p46 = scmp.eq.s32.totalorder %s20, 0
    %p47 = por %p45, %p46
    %s49 = sadd.s32 %s48, 1
    %p52 = scmp.eq.s32.totalorder %s14, 1
    %p53 = scmp.ne.s32.totalorder %s48, %s50
    %p54 = scmp.eq.s32.totalorder %s14, 0
    %p55 = por %p53, %p54
    %p56 = scmp.ne.s32.totalorder %s48, %s50
    %p57 = scmp.eq.s32.totalorder %s19, 1
    %p58 = por %p56, %p57
    %p59 = scmp.ne.s32.totalorder %s50, %s51
    %p60 = scmp.eq.s32.totalorder %s19, 0
    %p61 = por %p59, %p60
    %p62 = scmp.ne.s32.totalorder %s50, %s51
    %p63 = scmp.eq.s32.totalorder %s20, 1
    %p64 = por %p62, %p63
    %p66 = scmp.ne.s32.totalorder %s51, %s65
    %p67 = scmp.eq.s32.totalorder %s20, 0
    %p68 = por %p66, %p67
    %s70 = sadd.s32 %s69, 1
    %p73 = scmp.eq.s32.totalorder %s14, 1
    %p74 = scmp.ne.s32.totalorder %s69, %s71
    %p75 = scmp.eq.s32.totalorder %s14, 0
    %p76 = por %p74, %p75
    %p77 = scmp.ne.s32.totalorder %s69, %s71
    %p78 = scmp.eq.s32.totalorder %s19, 1
    %p79 = por %p77, %p78
    %p80 = scmp.ne.s32.totalorder %s71, %s72
    %p81 = scmp.eq.s32.totalorder %s19, 0
    %p82 = por %p80, %p81
    %p83 = scmp.ne.s32.totalorder %s71, %s72
    %p84 = scmp.eq.s32.totalorder %s20, 1
    %p85 = por %p83, %p84
    %p87 = scmp.ne.s32.totalorder %s72, %s86
    %p88 = scmp.eq.s32.totalorder %s20, 0
    %p89 = por %p87, %p88
    %s91 = sadd.s32 %s90, 1
    %p94 = scmp.eq.s32.totalorder %s14, 1
    %p95 = scmp.ne.s32.totalorder %s90, %s92
    %p96 = scmp.eq.s32.totalorder %s14, 0
    %p97 = por %p95, %p96
    %p98 = scmp.ne.s32.totalorder %s90, %s92
    %p99 = scmp.eq.s32.totalorder %s19, 1
    %p100 = por %p98, %p99
    %p101 = scmp.ne.s32.totalorder %s92, %s93
    %p102 = scmp.eq.s32.totalorder %s19, 0
    %p103 = por %p101, %p102
    %p104 = scmp.ne.s32.totalorder %s92, %s93
    %p105 = scmp.eq.s32.totalorder %s20, 1
    %p106 = por %p104, %p105
    %p108 = scmp.ne.s32.totalorder %s93, %s107
    %p109 = scmp.eq.s32.totalorder %s20, 0
    %p110 = por %p108, %p109
    %s112 = sadd.s32 %s111, 1
    %p115 = scmp.eq.s32.totalorder %s14, 1
    %p116 = scmp.ne.s32.totalorder %s111, %s113
    %p117 = scmp.eq.s32.totalorder %s14, 0
    %p118 = por %p116, %p117
    %p119 = scmp.ne.s32.totalorder %s111, %s113
    %p120 = scmp.eq.s32.totalorder %s19, 1
    %p121 = por %p119, %p120
    %p122 = scmp.ne.s32.totalorder %s113, %s114
    %p123 = scmp.eq.s32.totalorder %s19, 0
    %p124 = por %p122, %p123
    %p125 = scmp.ne.s32.totalorder %s113, %s114
    %p126 = scmp.eq.s32.totalorder %s20, 1
    %p127 = por %p125, %p126
    %p129 = scmp.ne.s32.totalorder %s114, %s128
    %p130 = scmp.eq.s32.totalorder %s20, 0
    %p131 = por %p129, %p130
    %s133 = sadd.s32 %s132, 1
    %p136 = scmp.eq.s32.totalorder %s14, 1
    %p137 = scmp.ne.s32.totalorder %s132, %s134
    %p138 = scmp.eq.s32.totalorder %s14, 0
    %p139 = por %p137, %p138
    %p140 = scmp.ne.s32.totalorder %s132, %s134
    %p141 = scmp.eq.s32.totalorder %s19, 1
    %p142 = por %p140, %p141
    %p143 = scmp.ne.s32.totalorder %s134, %s135
    %p144 = scmp.eq.s32.totalorder %s19, 0
    %p145 = por %p143, %p144
    %p146 = scmp.ne.s32.totalorder %s134, %s135
    %p147 = scmp.eq.s32.totalorder %s20, 1
    %p148 = por %p146, %p147
    %p150 = scmp.ne.s32.totalorder %s135, %s149
    %p151 = scmp.eq.s32.totalorder %s20, 0
    %p152 = por %p150, %p151
    %s154 = sadd.s32 %s153, 1
    %p157 = scmp.eq.s32.totalorder %s14, 1
    %p158 = scmp.ne.s32.totalorder %s153, %s155
    %p159 = scmp.eq.s32.totalorder %s14, 0
    %p160 = por %p158, %p159
    %p161 = scmp.ne.s32.totalorder %s153, %s155
    %p162 = scmp.eq.s32.totalorder %s19, 1
    %p163 = por %p161, %p162
    %p164 = scmp.ne.s32.totalorder %s155, %s156
    %p165 = scmp.eq.s32.totalorder %s19, 0
    %p166 = por %p164, %p165
    %p167 = scmp.ne.s32.totalorder %s155, %s156
    %p168 = scmp.eq.s32.totalorder %s20, 1
    %p169 = por %p167, %p168
    %p171 = scmp.ne.s32.totalorder %s156, %s170
    %p172 = scmp.eq.s32.totalorder %s20, 0
    %p173 = por %p171, %p172
    %s175 = sadd.s32 %s174, 1
    %p178 = scmp.eq.s32.totalorder %s14, 1
    %p179 = scmp.ne.s32.totalorder %s174, %s176
    %p180 = scmp.eq.s32.totalorder %s14, 0
    %p181 = por %p179, %p180
    %p182 = scmp.ne.s32.totalorder %s174, %s176
    %p183 = scmp.eq.s32.totalorder %s19, 1
    %p184 = por %p182, %p183
    %p185 = scmp.ne.s32.totalorder %s176, %s177
    %p186 = scmp.eq.s32.totalorder %s19, 0
    %p187 = por %p185, %p186
    %p188 = scmp.ne.s32.totalorder %s176, %s177
    %p189 = scmp.eq.s32.totalorder %s20, 1
    %p190 = por %p188, %p189
    %p192 = scmp.ne.s32.totalorder %s177, %s191
    %p193 = scmp.eq.s32.totalorder %s20, 0
    %p194 = por %p192, %p193
    %s195 = ssub.s32 %s14, %s21
    %p196 = scmp.eq.s32.totalorder %s195, 0
    %s198 = sadd.s32 %s197, 1
    %s199 = scalar_select %p196, %s197, %s198
    %p202 = pneg %p196
    %p203 = scmp.eq.s32.totalorder %s14, 1
    %p204 = por %p202, %p203
    %p205 = scmp.ne.s32.totalorder %s197, %s200
    %p206 = scmp.eq.s32.totalorder %s14, 0
    %p207 = por %p205, %p206
    %p208 = scmp.ne.s32.totalorder %s197, %s200
    %p209 = scmp.eq.s32.totalorder %s19, 1
    %p210 = por %p208, %p209
    %p211 = scmp.ne.s32.totalorder %s200, %s201
    %p212 = scmp.eq.s32.totalorder %s19, 0
    %p213 = por %p211, %p212
    %p214 = scmp.ne.s32.totalorder %s200, %s201
    %p215 = scmp.eq.s32.totalorder %s20, 1
    %p216 = por %p214, %p215
    %p218 = scmp.ne.s32.totalorder %s201, %s217
    %p219 = scmp.eq.s32.totalorder %s20, 0
    %p220 = por %p218, %p219
    %p221 = scmp.le.s32.totalorder 1, %s14
    %p222 = scmp.lt.s32.totalorder %s14, 3
    %p223 = pnand %p221, %p222
    %p224 = pneg %p223
    // Predicated region
    $region9: #{dense_encoder_forward.1} parent=5 // pred_check
      _
    $region10: #{dense_encoder_forward.1} parent=5 // pred_check_branch
      %226 = sbr.rel (%p223) target = $region12
    $region11: #{dense_encoder_forward.1} parent=5 // pred_region
      %s227 = ssub.s32 %s14, 1
      // Predicated region
      $region13: #{dense_encoder_forward.1} parent=11 // pred_check
        %p228 = pneg %p61
      $region14: #{dense_encoder_forward.1} parent=11 // pred_check_branch
        %230 = sbr.rel (%p228) target = $region16
      $region15: #{dense_encoder_forward.1} parent=11 // pred_region
        _
      $region16: #{dense_encoder_forward.1} parent=11 // pred_fallthru
        _
      // Predicated region
      $region17: #{dense_encoder_forward.1} parent=11 // pred_check
        %p231 = pneg %p82
      $region18: #{dense_encoder_forward.1} parent=11 // pred_check_branch
        %233 = sbr.rel (%p231) target = $region20
      $region19: #{dense_encoder_forward.1} parent=11 // pred_region
        _
      $region20: #{dense_encoder_forward.1} parent=11 // pred_fallthru
        _
      // Predicated region
      $region21: #{dense_encoder_forward.1} parent=11 // pred_check
        %p234 = pneg %p103
      $region22: #{dense_encoder_forward.1} parent=11 // pred_check_branch
        %236 = sbr.rel (%p234) target = $region24
      $region23: #{dense_encoder_forward.1} parent=11 // pred_region
        _
      $region24: #{dense_encoder_forward.1} parent=11 // pred_fallthru
        _
      // Predicated region
      $region25: #{dense_encoder_forward.1} parent=11 // pred_check
        %p237 = pneg %p124
      $region26: #{dense_encoder_forward.1} parent=11 // pred_check_branch
        %239 = sbr.rel (%p237) target = $region28
      $region27: #{dense_encoder_forward.1} parent=11 // pred_region
        _
      $region28: #{dense_encoder_forward.1} parent=11 // pred_fallthru
        _
      // Predicated region
      $region29: #{dense_encoder_forward.1} parent=11 // pred_check
        %p240 = pneg %p145
      $region30: #{dense_encoder_forward.1} parent=11 // pred_check_branch
        %242 = sbr.rel (%p240) target = $region32
      $region31: #{dense_encoder_forward.1} parent=11 // pred_region
        _
      $region32: #{dense_encoder_forward.1} parent=11 // pred_fallthru
        _
      // Predicated region
      $region33: #{dense_encoder_forward.1} parent=11 // pred_check
        %p243 = pneg %p166
      $region34: #{dense_encoder_forward.1} parent=11 // pred_check_branch
        %245 = sbr.rel (%p243) target = $region36
      $region35: #{dense_encoder_forward.1} parent=11 // pred_region
        _
      $region36: #{dense_encoder_forward.1} parent=11 // pred_fallthru
        _
      // Predicated region
      $region37: #{dense_encoder_forward.1} parent=11 // pred_check
        %p246 = pneg %p187
      $region38: #{dense_encoder_forward.1} parent=11 // pred_check_branch
        %248 = sbr.rel (%p246) target = $region40
      $region39: #{dense_encoder_forward.1} parent=11 // pred_region
        _
      $region40: #{dense_encoder_forward.1} parent=11 // pred_fallthru
        _
    $region12: #{dense_encoder_forward.1} parent=5 // pred_fallthru
      _
    %p249 = scmp.lt.s32.totalorder %s14, 2
    // Predicated region
    $region41: #{dense_encoder_forward.1} parent=5 // pred_check
      %p250 = pneg %p249
    $region42: #{dense_encoder_forward.1} parent=5 // pred_check_branch
      %252 = sbr.rel (%p250) target = $region44
    $region43: #{dense_encoder_forward.1} parent=5 // pred_region
      // Predicated region
      $region45: #{dense_encoder_forward.1} parent=43 // pred_check
        %p253 = pneg %p34
      $region46: #{dense_encoder_forward.1} parent=43 // pred_check_branch
        %255 = sbr.rel (%p253) target = $region48
      $region47: #{dense_encoder_forward.1} parent=43 // pred_region
        %p256 = scmp.lt.s32.totalorder %s14, 1
        %s257 = scalar_select %p256, %s14, 1
        %s258 = scalar_lea.vmem %s0, %s257
      $region48: #{dense_encoder_forward.1} parent=43 // pred_fallthru
        _
    $region44: #{dense_encoder_forward.1} parent=5 // pred_fallthru
      _
    %p259 = scmp.le.s32.totalorder 1, %s14
    %p260 = scmp.lt.s32.totalorder %s14, 3
    %p261 = pnand %p259, %p260
    %p262 = pneg %p261
    // Predicated region
    $region49: #{dense_encoder_forward.1} parent=5 // pred_check
      _
    $region50: #{dense_encoder_forward.1} parent=5 // pred_check_branch
      %264 = sbr.rel (%p261) target = $region52
    $region51: #{dense_encoder_forward.1} parent=5 // pred_region
      %s265 = ssub.s32 %s14, 1
      %p266 = scmp.lt.s32.totalorder %s19, 1
      %s267 = scalar_select %p266, %s19, 1
      %s268 = scalar_lea.vmem %s0, %s267
      %p269 = pneg %p40
      %p270 = pneg %p37
      %p271 = pneg %p61
      %p272 = pneg %p58
      %p273 = pneg %p82
      %p274 = pneg %p79
      %p275 = pneg %p103
      %p276 = pneg %p100
      %p277 = pneg %p124
      %p278 = pneg %p121
      %p279 = pneg %p145
      %p280 = pneg %p142
      %p281 = pneg %p166
      %p282 = pneg %p163
      %p283 = pneg %p187
      %p284 = pneg %p184
      %p285 = pneg %p213
      %p286 = pneg %p210
      %p287 = scmp.lt.s32.totalorder %s19, 1
      %s288 = scalar_select %p287, %s19, 1
      %s289 = smul.addr %s288, 8
      %s290 = scalar_lea.vmem %s8, %s289
      %p291 = scmp.lt.s32.totalorder %s19, 1
      %s292 = scalar_select %p291, %s19, 1
      %s293 = scalar_lea.vmem %s0, %s292
      %p294 = scmp.lt.s32.totalorder %s19, 1
      %s295 = scalar_select %p294, %s19, 1
      %s296 = smul.addr %s295, 8
      %s297 = scalar_lea.vmem %s8, %s296
      %v299 = vlaneseq
      %v300 = vand.u32 %v299, 127
      %vm301 = vcmp.lt.s32.totalorder %v300, 0
      %v302 = vsub.s32 0, %v300
      %v303 = vsel %vm301, %v302, %v300
      %v304 = vshrl.u32 %v303, 4
      %v305 = vand.u32 %v303, 15
      %v306 = vsub.s32 0, %v305
      %v307 = vsel %vm301, %v306, %v305
      %vm308 = vcmp.ne.s32.totalorder %v307, 0
      %vm309 = vcmp.lt.s32.totalorder %v307, 0
      %vm310 = vmand %vm309, %vm308
      %v311 = vadd.s32 %v307, 16
      %v312 = vsel %vm310, %v311, %v307
      %vm313 = vcmp.ge.s32.totalorder %v312, 1
      %vm314 = vcmp.le.s32.totalorder %v312, 14
      %v315 = vld [vmem:[%s293] sm:$0x1]
      %v316 = vld [vmem:[%s1] sm:$0xf]
      %vm317 = vcmask 15360
      %v319 = vsel %vm317, %v316, 0
      %vm321 = vcmask 1040384
      %v323 = vsel %vm321, %v315, 0
      %325 = vmatprep.subr.bf16.mxu0 0
      %326 = vmatpush1.bf16.msra.mxu0 %v323
      %327 = vmatprep.subr.bf16.mxu0 0
      %328 = vmatpush1.bf16.msra.mxu0 0
      %329 = vmatprep.subr.bf16.mxu0 0
      %330 = vmatpush1.bf16.msra.mxu0 0
      %331 = vmatprep.subr.bf16.mxu0 0
      %332 = vmatpush1.bf16.msra.mxu0 0
      %333 = vmatprep.subr.bf16.mxu0 0
      %334 = vmatpush1.bf16.msra.mxu0 0
      %335 = vmatprep.subr.bf16.mxu0 0
      %336 = vmatpush1.bf16.msra.mxu0 0
      %337 = vmatprep.subr.bf16.mxu0 0
      %338 = vmatpush1.bf16.msra.mxu0 0
      %339 = vmatprep.subr.bf16.mxu0 0
      %340 = vmatpush1.bf16.msra.mxu0 0
      %341 = vmatprep.subr.bf16.mxu0 0
      %342 = vmatpush1.bf16.msra.mxu0 0
      %343 = vmatprep.subr.bf16.mxu0 0
      %344 = vmatpush1.bf16.msra.mxu0 0
      %345 = vmatprep.subr.bf16.mxu0 0
      %346 = vmatpush1.bf16.msra.mxu0 0
      %347 = vmatprep.subr.bf16.mxu0 0
      %348 = vmatpush1.bf16.msra.mxu0 0
      %349 = vmatprep.subr.bf16.mxu0 0
      %350 = vmatpush1.bf16.msra.mxu0 0
      %351 = vmatprep.subr.bf16.mxu0 0
      %352 = vmatpush1.bf16.msra.mxu0 0
      %353 = vmatprep.subr.bf16.mxu0 0
      %354 = vmatpush1.bf16.msra.mxu0 0
      %355 = vmatprep.subr.bf16.mxu0 0
      %356 = vmatpush1.bf16.msra.mxu0 0
      %357 = vmatprep.mubr.bf16.mxu0 0
      %358 = vmatmul.mubr.bf16.gmra.mrb[0].mxu0 %v319
      %v359 = vpop.f32.mrb[0].mxu0
      %v360 = vadd.f32 0.0, %v359
      %v361 = vpop.f32.mrb[0].mxu0
      %v362 = vpop.f32.mrb[0].mxu0
      %v363 = vpop.f32.mrb[0].mxu0
      %364 = vdwg.mxu0
      %v365 = vld [vmem:[%s7] sm:$0xff]
      %366 = vadd.xlane.f32.xlu0 %v360
      %v367 = vpop.xlane.xlu0 %366
      %v368 = vrcp.pop 128.0
      %v369 = vmul.f32 %v367, %v368
      %v370 = vsub.f32 %v360, %v369
      %v371 = vmul.f32 %v370, %v370
      %372 = vadd.xlane.f32.xlu0 %v371
      %v373 = vpop.xlane.xlu0 %372
      %v374 = vmul.f32 %v373, %v368
      %v375 = vadd.f32 %v374, 1e-05
      %v376 = vrsqrt.pop %v375
      %v377 = vmul.f32 %v370, %v376
      %379 = vset.pattern.permute.xlu0 0
      %380 = vperm.xlu0 %379, %v365
      %v381 = vpop.permute.xlu0 %380
      %v383 = vmul.f32 %v377, %v381
      %384 = vset.pattern.permute.xlu0 1
      %385 = vperm.xlu0 %384, %v365
      %v386 = vpop.permute.xlu0 %385
      %v388 = vadd.f32 %v383, %v386
      %vm389 = vcmp.ge.f32.partialorder %v388, 0.0
      %390 = vset.pattern.permute.xlu0 2
      %391 = vperm.xlu0 %390, %v365
      %v392 = vpop.permute.xlu0 %391
      %v394 = vmul.f32 %v392, %v388
      %v395 = vsel %vm389, %v388, %v394
      %vm396 = vcmp.ge.s32.totalorder %v300, 16
      %398 = vrot.lane.b32.xlu0 %v395, 17
      %v399 = vpop.permute.xlu0 %398
      %vm401 = vmand %vm396, %vm313
      %v402 = vsel %vm401, 1, 0
      %vm403 = vcmp.eq.s32.totalorder %v402, 1
      %v404 = vsel %vm403, %v399, 0.0
      %405 = vrot.lane.b32.xlu0 %v395, 16
      %v406 = vpop.permute.xlu0 %405
      %vm408 = vcmask 130048
      %v409 = vsel %vm396, 1, 0
      %vm410 = vcmp.eq.s32.totalorder %v409, 1
      %v411 = vsel %vm410, %v406, 0.0
      %412 = vrot.lane.b32.xlu0 %v395, 15
      %v413 = vpop.permute.xlu0 %412
      %vm415 = vmand %vm396, %vm314
      %v416 = vsel %vm415, 1, 0
      %vm417 = vcmp.eq.s32.totalorder %v416, 1
      %v418 = vsel %vm417, %v413, 0.0
      %419 = vrot.lane.b32.xlu0 %v395, 1
      %v420 = vpop.permute.xlu0 %419
      %v422 = vsel %vm313, 1, 0
      %vm423 = vcmp.eq.s32.totalorder %v422, 1
      %v424 = vsel %vm423, %v420, 0.0
      %425 = vrot.lane.b32.xlu0 %v395, 127
      %v426 = vpop.permute.xlu0 %425
      %v428 = vsel %vm314, 1, 0
      %vm429 = vcmp.eq.s32.totalorder %v428, 1
      %v430 = vsel %vm429, %v426, 0.0
      %v431 = vld [vmem:[%s2] sm:$0xf]
      %v432 = vpack.c.bf16 %v411, %v404
      %v433 = vpack.c.bf16 %v424, %v418
      %v434 = vpack.c.bf16 %v430, %v395
      %vm435 = vcmask 392192
      %v437 = vsel %vm435, %v431, 0
      %439 = vmatprep.subr.bf16.mxu0 0
      %440 = vmatpush1.bf16.msra.mxu0 %v432
      %441 = vmatprep.subr.bf16.mxu0 0
      %442 = vmatpush1.bf16.msra.mxu0 %v433
      %443 = vmatprep.subr.bf16.mxu0 0
      %444 = vmatpush1.bf16.msra.mxu0 %v434
      %445 = vmatprep.subr.bf16.mxu0 0
      %446 = vmatpush1.bf16.msra.mxu0 0
      %447 = vmatprep.subr.bf16.mxu0 0
      %448 = vmatpush1.bf16.msra.mxu0 0
      %449 = vmatprep.subr.bf16.mxu0 0
      %450 = vmatpush1.bf16.msra.mxu0 0
      %451 = vmatprep.subr.bf16.mxu0 0
      %452 = vmatpush1.bf16.msra.mxu0 0
      %453 = vmatprep.subr.bf16.mxu0 0
      %454 = vmatpush1.bf16.msra.mxu0 0
      %455 = vmatprep.subr.bf16.mxu0 0
      %456 = vmatpush1.bf16.msra.mxu0 0
      %457 = vmatprep.subr.bf16.mxu0 0
      %458 = vmatpush1.bf16.msra.mxu0 0
      %459 = vmatprep.subr.bf16.mxu0 0
      %460 = vmatpush1.bf16.msra.mxu0 0
      %461 = vmatprep.subr.bf16.mxu0 0
      %462 = vmatpush1.bf16.msra.mxu0 0
      %463 = vmatprep.subr.bf16.mxu0 0
      %464 = vmatpush1.bf16.msra.mxu0 0
      %465 = vmatprep.subr.bf16.mxu0 0
      %466 = vmatpush1.bf16.msra.mxu0 0
      %467 = vmatprep.subr.bf16.mxu0 0
      %468 = vmatpush1.bf16.msra.mxu0 0
      %469 = vmatprep.subr.bf16.mxu0 0
      %470 = vmatpush1.bf16.msra.mxu0 0
      %471 = vmatprep.mubr.bf16.mxu0 0
      %472 = vmatmul.mubr.bf16.gmra.mrb[0].mxu0 %v437
      %v473 = vpop.f32.mrb[0].mxu0
      %v474 = vadd.f32 0.0, %v473
      %v475 = vpop.f32.mrb[0].mxu0
      %v476 = vpop.f32.mrb[0].mxu0
      %v477 = vpop.f32.mrb[0].mxu0
      %478 = vdwg.mxu0
      %s479 = scalar_lea.vmem %s7, 8
      %v480 = vld [vmem:[%s479] sm:$0xff]
      %481 = vadd.xlane.f32.xlu0 %v474
      %v482 = vpop.xlane.xlu0 %481
      %v483 = vmul.f32 %v482, %v368
      %v484 = vsub.f32 %v474, %v483
      %v485 = vmul.f32 %v484, %v484
      %486 = vadd.xlane.f32.xlu0 %v485
      %v487 = vpop.xlane.xlu0 %486
      %v488 = vmul.f32 %v487, %v368
      %v489 = vadd.f32 %v488, 1e-05
      %v490 = vrsqrt.pop %v489
      %v491 = vmul.f32 %v484, %v490
      %493 = vset.pattern.permute.xlu0 0
      %494 = vperm.xlu0 %493, %v480
      %v495 = vpop.permute.xlu0 %494
      %v497 = vmul.f32 %v491, %v495
      %498 = vset.pattern.permute.xlu0 1
      %499 = vperm.xlu0 %498, %v480
      %v500 = vpop.permute.xlu0 %499
      %v502 = vadd.f32 %v497, %v500
      %vm503 = vcmp.ge.f32.partialorder %v502, 0.0
      %504 = vset.pattern.permute.xlu0 2
      %505 = vperm.xlu0 %504, %v480
      %v506 = vpop.permute.xlu0 %505
      %v508 = vmul.f32 %v506, %v502
      %v509 = vsel %vm503, %v502, %v508
      %vm510 = vcmp.ge.s32.totalorder %v300, 32
      %512 = vrot.lane.b32.xlu0 %v509, 33
      %v513 = vpop.permute.xlu0 %512
      %vm515 = vmand %vm510, %vm313
      %v516 = vsel %vm515, 1, 0
      %vm517 = vcmp.eq.s32.totalorder %v516, 1
      %v518 = vsel %vm517, %v513, 0.0
      %519 = vrot.lane.b32.xlu0 %v509, 32
      %v520 = vpop.permute.xlu0 %519
      %v522 = vsel %vm510, 1, 0
      %vm523 = vcmp.eq.s32.totalorder %v522, 1
      %v524 = vsel %vm523, %v520, 0.0
      %525 = vrot.lane.b32.xlu0 %v509, 31
      %v526 = vpop.permute.xlu0 %525
      %vm528 = vmand %vm510, %vm314
      %v529 = vsel %vm528, 1, 0
      %vm530 = vcmp.eq.s32.totalorder %v529, 1
      %v531 = vsel %vm530, %v526, 0.0
      %532 = vrot.lane.b32.xlu0 %v509, 1
      %v533 = vpop.permute.xlu0 %532
      %v535 = vsel %vm423, %v533, 0.0
      %536 = vrot.lane.b32.xlu0 %v509, 127
      %v537 = vpop.permute.xlu0 %536
      %v539 = vsel %vm429, %v537, 0.0
      %540 = vrot.lane.b32.xlu0 %v395, 33
      %v541 = vpop.permute.xlu0 %540
      %v543 = vsel %vm517, %v541, 0.0
      %544 = vrot.lane.b32.xlu0 %v395, 32
      %v545 = vpop.permute.xlu0 %544
      %v547 = vsel %vm523, %v545, 0.0
      %548 = vrot.lane.b32.xlu0 %v395, 31
      %v549 = vpop.permute.xlu0 %548
      %v551 = vsel %vm530, %v549, 0.0
      %v552 = vld [vmem:[%s3] sm:$0xf]
      %v553 = vpack.c.bf16 %v524, %v518
      %v554 = vpack.c.bf16 %v535, %v531
      %v555 = vpack.c.bf16 %v539, %v509
      %v556 = vpack.c.bf16 %v547, %v543
      %v557 = vpack.c.bf16 %v424, %v551
      %vm558 = vcmask 785408
      %v560 = vsel %vm558, %v552, 0
      %562 = vmatprep.subr.bf16.mxu0 0
      %563 = vmatpush1.bf16.msra.mxu0 %v553
      %564 = vmatprep.subr.bf16.mxu0 0
      %565 = vmatpush1.bf16.msra.mxu0 %v554
      %566 = vmatprep.subr.bf16.mxu0 0
      %567 = vmatpush1.bf16.msra.mxu0 %v555
      %568 = vmatprep.subr.bf16.mxu0 0
      %569 = vmatpush1.bf16.msra.mxu0 %v556
      %570 = vmatprep.subr.bf16.mxu0 0
      %571 = vmatpush1.bf16.msra.mxu0 %v557
      %572 = vmatprep.subr.bf16.mxu0 0
      %573 = vmatpush1.bf16.msra.mxu0 %v434
      %574 = vmatprep.subr.bf16.mxu0 0
      %575 = vmatpush1.bf16.msra.mxu0 0
      %576 = vmatprep.subr.bf16.mxu0 0
      %577 = vmatpush1.bf16.msra.mxu0 0
      %578 = vmatprep.subr.bf16.mxu0 0
      %579 = vmatpush1.bf16.msra.mxu0 0
      %580 = vmatprep.subr.bf16.mxu0 0
      %581 = vmatpush1.bf16.msra.mxu0 0
      %582 = vmatprep.subr.bf16.mxu0 0
      %583 = vmatpush1.bf16.msra.mxu0 0
      %584 = vmatprep.subr.bf16.mxu0 0
      %585 = vmatpush1.bf16.msra.mxu0 0
      %586 = vmatprep.subr.bf16.mxu0 0
      %587 = vmatpush1.bf16.msra.mxu0 0
      %588 = vmatprep.subr.bf16.mxu0 0
      %589 = vmatpush1.bf16.msra.mxu0 0
      %590 = vmatprep.subr.bf16.mxu0 0
      %591 = vmatpush1.bf16.msra.mxu0 0
      %592 = vmatprep.subr.bf16.mxu0 0
      %593 = vmatpush1.bf16.msra.mxu0 0
      %594 = vmatprep.mubr.bf16.mxu0 0
      %595 = vmatmul.mubr.bf16.gmra.mrb[0].mxu0 %v560
      %v596 = vpop.f32.mrb[0].mxu0
      %v597 = vadd.f32 0.0, %v596
      %v598 = vpop.f32.mrb[0].mxu0
      %v599 = vpop.f32.mrb[0].mxu0
      %v600 = vpop.f32.mrb[0].mxu0
      %601 = vdwg.mxu0
      %s602 = scalar_lea.vmem %s7, 16
      %v603 = vld [vmem:[%s602] sm:$0xff]
      %604 = vadd.xlane.f32.xlu0 %v597
      %v605 = vpop.xlane.xlu0 %604
      %v606 = vmul.f32 %v605, %v368
      %v607 = vsub.f32 %v597, %v606
      %v608 = vmul.f32 %v607, %v607
      %609 = vadd.xlane.f32.xlu0 %v608
      %v610 = vpop.xlane.xlu0 %609
      %v611 = vmul.f32 %v610, %v368
      %v612 = vadd.f32 %v611, 1e-05
      %v613 = vrsqrt.pop %v612
      %v614 = vmul.f32 %v607, %v613
      %616 = vset.pattern.permute.xlu0 0
      %617 = vperm.xlu0 %616, %v603
      %v618 = vpop.permute.xlu0 %617
      %v620 = vmul.f32 %v614, %v618
      %621 = vset.pattern.permute.xlu0 1
      %622 = vperm.xlu0 %621, %v603
      %v623 = vpop.permute.xlu0 %622
      %v625 = vadd.f32 %v620, %v623
      %vm626 = vcmp.ge.f32.partialorder %v625, 0.0
      %627 = vset.pattern.permute.xlu0 2
      %628 = vperm.xlu0 %627, %v603
      %v629 = vpop.permute.xlu0 %628
      %v631 = vmul.f32 %v629, %v625
      %v632 = vsel %vm626, %v625, %v631
      %vm633 = vcmp.ge.s32.totalorder %v300, 64
      %635 = vrot.lane.b32.xlu0 %v632, 65
      %v636 = vpop.permute.xlu0 %635
      %vm638 = vmand %vm633, %vm313
      %v639 = vsel %vm638, 1, 0
      %vm640 = vcmp.eq.s32.totalorder %v639, 1
      %v641 = vsel %vm640, %v636, 0.0
      %642 = vrot.lane.b32.xlu0 %v632, 64
      %v643 = vpop.permute.xlu0 %642
      %vm645 = vcmask 523264
      %v646 = vsel %vm633, 1, 0
      %vm647 = vcmp.eq.s32.totalorder %v646, 1
      %v648 = vsel %vm647, %v643, 0.0
      %649 = vrot.lane.b32.xlu0 %v632, 63
      %v650 = vpop.permute.xlu0 %649
      %vm652 = vmand %vm633, %vm314
      %v653 = vsel %vm652, 1, 0
      %vm654 = vcmp.eq.s32.totalorder %v653, 1
      %v655 = vsel %vm654, %v650, 0.0
      %656 = vrot.lane.b32.xlu0 %v632, 1
      %v657 = vpop.permute.xlu0 %656
      %v659 = vsel %vm423, %v657, 0.0
      %660 = vrot.lane.b32.xlu0 %v632, 127
      %v661 = vpop.permute.xlu0 %660
      %v663 = vsel %vm429, %v661, 0.0
      %664 = vrot.lane.b32.xlu0 %v509, 65
      %v665 = vpop.permute.xlu0 %664
      %v667 = vsel %vm640, %v665, 0.0
      %668 = vrot.lane.b32.xlu0 %v509, 64
      %v669 = vpop.permute.xlu0 %668
      %v671 = vsel %vm647, %v669, 0.0
      %672 = vrot.lane.b32.xlu0 %v509, 63
      %v673 = vpop.permute.xlu0 %672
      %v675 = vsel %vm654, %v673, 0.0
      %676 = vrot.lane.b32.xlu0 %v395, 65
      %v677 = vpop.permute.xlu0 %676
      %v679 = vsel %vm640, %v677, 0.0
      %680 = vrot.lane.b32.xlu0 %v395, 64
      %v681 = vpop.permute.xlu0 %680
      %v683 = vsel %vm647, %v681, 0.0
      %684 = vrot.lane.b32.xlu0 %v395, 63
      %v685 = vpop.permute.xlu0 %684
      %v687 = vsel %vm654, %v685, 0.0
      %v688 = vld [vmem:[%s4] sm:$0xff]
      %v689 = vpack.c.bf16 %v648, %v641
      %v690 = vpack.c.bf16 %v659, %v655
      %v691 = vpack.c.bf16 %v663, %v632
      %v692 = vpack.c.bf16 %v671, %v667
      %v693 = vpack.c.bf16 %v535, %v675
      %v694 = vpack.c.bf16 %v683, %v679
      %v695 = vpack.c.bf16 %v424, %v687
      %v697 = vunpack.c.l.b16 %v688
      %v698 = vunpack.c.h.b16 %v688
      %v699 = vpack.c.b16 %v697, %v697
      %v700 = vpack.c.b16 %v698, %v698
      %v703 = vsel %vm408, %v700, 0
      %705 = vmatprep.subr.bf16.mxu0 0
      %706 = vmatpush1.bf16.msra.mxu0 %v689
      %707 = vmatprep.subr.bf16.mxu0 0
      %708 = vmatpush1.bf16.msra.mxu0 %v690
      %709 = vmatprep.subr.bf16.mxu0 0
      %710 = vmatpush1.bf16.msra.mxu0 %v691
      %711 = vmatprep.subr.bf16.mxu0 0
      %712 = vmatpush1.bf16.msra.mxu0 %v692
      %713 = vmatprep.subr.bf16.mxu0 0
      %714 = vmatpush1.bf16.msra.mxu0 %v693
      %715 = vmatprep.subr.bf16.mxu0 0
      %716 = vmatpush1.bf16.msra.mxu0 %v555
      %717 = vmatprep.subr.bf16.mxu0 0
      %718 = vmatpush1.bf16.msra.mxu0 %v694
      %719 = vmatprep.subr.bf16.mxu0 0
      %720 = vmatpush1.bf16.msra.mxu0 %v695
      %721 = vmatprep.subr.bf16.mxu0 0
      %722 = vmatpush1.bf16.msra.mxu0 %v434
      %723 = vmatprep.subr.bf16.mxu0 0
      %724 = vmatpush1.bf16.msra.mxu0 0
      %725 = vmatprep.subr.bf16.mxu0 0
      %726 = vmatpush1.bf16.msra.mxu0 0
      %727 = vmatprep.subr.bf16.mxu0 0
      %728 = vmatpush1.bf16.msra.mxu0 0
      %729 = vmatprep.subr.bf16.mxu0 0
      %730 = vmatpush1.bf16.msra.mxu0 0
      %731 = vmatprep.subr.bf16.mxu0 0
      %732 = vmatpush1.bf16.msra.mxu0 0
      %733 = vmatprep.subr.bf16.mxu0 0
      %734 = vmatpush1.bf16.msra.mxu0 0
      %735 = vmatprep.subr.bf16.mxu0 0
      %736 = vmatpush1.bf16.msra.mxu0 0
      %737 = vmatprep.mubr.bf16.mxu0 %v703
      %738 = vmatmul.mubr.bf16.gmra.mrb[0].mxu0 %v699
      %v739 = vpop.f32.mrb[0].mxu0
      %v740 = vadd.f32 0.0, %v739
      %v741 = vpop.f32.mrb[0].mxu0
      %v742 = vpop.f32.mrb[0].mxu0
      %v743 = vpop.f32.mrb[0].mxu0
      %744 = vdwg.mxu0
      %s745 = scalar_lea.vmem %s7, 24
      %v746 = vld [vmem:[%s745] sm:$0xff]
      %747 = vadd.xlane.f32.xlu0 %v740
      %v748 = vpop.xlane.xlu0 %747
      %v749 = vmul.f32 %v748, %v368
      %v750 = vsub.f32 %v740, %v749
      %v751 = vmul.f32 %v750, %v750
      %752 = vadd.xlane.f32.xlu0 %v751
      %v753 = vpop.xlane.xlu0 %752
      %v754 = vmul.f32 %v753, %v368
      %v755 = vadd.f32 %v754, 1e-05
      %v756 = vrsqrt.pop %v755
      %v757 = vmul.f32 %v750, %v756
      %759 = vset.pattern.permute.xlu0 0
      %760 = vperm.xlu0 %759, %v746
      %v761 = vpop.permute.xlu0 %760
      %v763 = vmul.f32 %v757, %v761
      %764 = vset.pattern.permute.xlu0 1
      %765 = vperm.xlu0 %764, %v746
      %v766 = vpop.permute.xlu0 %765
      %v768 = vadd.f32 %v763, %v766
      %vm769 = vcmp.ge.f32.partialorder %v768, 0.0
      %770 = vset.pattern.permute.xlu0 2
      %771 = vperm.xlu0 %770, %v746
      %v772 = vpop.permute.xlu0 %771
      %v774 = vmul.f32 %v772, %v768
      %v775 = vsel %vm769, %v768, %v774
      %777 = vrot.lane.b32.xlu0 %v775, 1
      %v778 = vpop.permute.xlu0 %777
      %v780 = vsel %vm423, %v778, 0.0
      %781 = vrot.lane.b32.xlu0 %v775, 127
      %v782 = vpop.permute.xlu0 %781
      %v784 = vsel %vm429, %v782, 0.0
      %v785 = vld [vmem:[%s5] sm:$0xff]
      %v786 = vpack.c.bf16 0.0, 0.0
      %v787 = vpack.c.bf16 %v780, 0.0
      %v788 = vpack.c.bf16 %v784, %v775
      %v789 = vpack.c.bf16 %v659, 0.0
      %v790 = vpack.c.bf16 %v535, 0.0
      %v791 = vpack.c.bf16 %v424, 0.0
      %v793 = vunpack.c.l.b16 %v785
      %v794 = vunpack.c.h.b16 %v785
      %v795 = vpack.c.b16 %v793, %v793
      %v796 = vpack.c.b16 %v794, %v794
      %v799 = vsel %vm645, %v796, 0
      %801 = vmatprep.subr.bf16.mxu0 0
      %802 = vmatpush1.bf16.msra.mxu0 %v786
      %803 = vmatprep.subr.bf16.mxu0 0
      %804 = vmatpush1.bf16.msra.mxu0 %v787
      %805 = vmatprep.subr.bf16.mxu0 0
      %806 = vmatpush1.bf16.msra.mxu0 %v788
      %807 = vmatprep.subr.bf16.mxu0 0
      %808 = vmatpush1.bf16.msra.mxu0 %v786
      %809 = vmatprep.subr.bf16.mxu0 0
      %810 = vmatpush1.bf16.msra.mxu0 %v789
      %811 = vmatprep.subr.bf16.mxu0 0
      %812 = vmatpush1.bf16.msra.mxu0 %v691
      %813 = vmatprep.subr.bf16.mxu0 0
      %814 = vmatpush1.bf16.msra.mxu0 %v786
      %815 = vmatprep.subr.bf16.mxu0 0
      %816 = vmatpush1.bf16.msra.mxu0 %v790
      %817 = vmatprep.subr.bf16.mxu0 0
      %818 = vmatpush1.bf16.msra.mxu0 %v555
      %819 = vmatprep.subr.bf16.mxu0 0
      %820 = vmatpush1.bf16.msra.mxu0 %v786
      %821 = vmatprep.subr.bf16.mxu0 0
      %822 = vmatpush1.bf16.msra.mxu0 %v791
      %823 = vmatprep.subr.bf16.mxu0 0
      %824 = vmatpush1.bf16.msra.mxu0 %v434
      %825 = vmatprep.subr.bf16.mxu0 0
      %826 = vmatpush1.bf16.msra.mxu0 0
      %827 = vmatprep.subr.bf16.mxu0 0
      %828 = vmatpush1.bf16.msra.mxu0 0
      %829 = vmatprep.subr.bf16.mxu0 0
      %830 = vmatpush1.bf16.msra.mxu0 0
      %831 = vmatprep.subr.bf16.mxu0 0
      %832 = vmatpush1.bf16.msra.mxu0 0
      %833 = vmatprep.mubr.bf16.mxu0 %v799
      %834 = vmatmul.mubr.bf16.gmra.mrb[0].mxu0 %v795
      %v835 = vpop.f32.mrb[0].mxu0
      %v836 = vadd.f32 0.0, %v835
      %v837 = vpop.f32.mrb[0].mxu0
      %v838 = vpop.f32.mrb[0].mxu0
      %v839 = vpop.f32.mrb[0].mxu0
      %840 = vdwg.mxu0
      %s841 = scalar_lea.vmem %s7, 32
      %v842 = vld [vmem:[%s841] sm:$0xff]
      %843 = vadd.xlane.f32.xlu0 %v836
      %v844 = vpop.xlane.xlu0 %843
      %v845 = vmul.f32 %v844, %v368
      %v846 = vsub.f32 %v836, %v845
      %v847 = vmul.f32 %v846, %v846
      %848 = vadd.xlane.f32.xlu0 %v847
      %v849 = vpop.xlane.xlu0 %848
      %v850 = vmul.f32 %v849, %v368
      %v851 = vadd.f32 %v850, 1e-05
      %v852 = vrsqrt.pop %v851
      %v853 = vmul.f32 %v846, %v852
      %855 = vset.pattern.permute.xlu0 0
      %856 = vperm.xlu0 %855, %v842
      %v857 = vpop.permute.xlu0 %856
      %v859 = vmul.f32 %v853, %v857
      %860 = vset.pattern.permute.xlu0 1
      %861 = vperm.xlu0 %860, %v842
      %v862 = vpop.permute.xlu0 %861
      %v864 = vadd.f32 %v859, %v862
      %vm865 = vcmp.ge.f32.partialorder %v864, 0.0
      %866 = vset.pattern.permute.xlu0 2
      %867 = vperm.xlu0 %866, %v842
      %v868 = vpop.permute.xlu0 %867
      %v870 = vmul.f32 %v868, %v864
      %v871 = vsel %vm865, %v864, %v870
      %873 = vrot.lane.b32.xlu0 %v871, 1
      %v874 = vpop.permute.xlu0 %873
      %v876 = vsel %vm423, %v874, 0.0
      %877 = vrot.lane.b32.xlu0 %v871, 127
      %v878 = vpop.permute.xlu0 %877
      %v880 = vsel %vm429, %v878, 0.0
      %v881 = vld [vmem:[%s6] sm:$0xf]
      %v882 = vpack.c.bf16 %v871, %v876
      %v883 = vpack.c.bf16 %v880, %v880
      %vm884 = vcmask 195584
      %v886 = vsel %vm884, %v881, 0
      %vm888 = vcmask 1043456
      %v890 = vsel %vm888, %v883, 0
      %892 = vmatprep.subr.bf16.mxu0 0
      %893 = vmatpush1.bf16.msra.mxu0 %v882
      %894 = vmatprep.subr.bf16.mxu0 0
      %895 = vmatpush1.bf16.msra.mxu0 %v890
      %896 = vmatprep.subr.bf16.mxu0 0
      %897 = vmatpush1.bf16.msra.mxu0 0
      %898 = vmatprep.subr.bf16.mxu0 0
      %899 = vmatpush1.bf16.msra.mxu0 0
      %900 = vmatprep.subr.bf16.mxu0 0
      %901 = vmatpush1.bf16.msra.mxu0 0
      %902 = vmatprep.subr.bf16.mxu0 0
      %903 = vmatpush1.bf16.msra.mxu0 0
      %904 = vmatprep.subr.bf16.mxu0 0
      %905 = vmatpush1.bf16.msra.mxu0 0
      %906 = vmatprep.subr.bf16.mxu0 0
      %907 = vmatpush1.bf16.msra.mxu0 0
      %908 = vmatprep.subr.bf16.mxu0 0
      %909 = vmatpush1.bf16.msra.mxu0 0
      %910 = vmatprep.subr.bf16.mxu0 0
      %911 = vmatpush1.bf16.msra.mxu0 0
      %912 = vmatprep.subr.bf16.mxu0 0
      %913 = vmatpush1.bf16.msra.mxu0 0
      %914 = vmatprep.subr.bf16.mxu0 0
      %915 = vmatpush1.bf16.msra.mxu0 0
      %916 = vmatprep.subr.bf16.mxu0 0
      %917 = vmatpush1.bf16.msra.mxu0 0
      %918 = vmatprep.subr.bf16.mxu0 0
      %919 = vmatpush1.bf16.msra.mxu0 0
      %920 = vmatprep.subr.bf16.mxu0 0
      %921 = vmatpush1.bf16.msra.mxu0 0
      %922 = vmatprep.subr.bf16.mxu0 0
      %923 = vmatpush1.bf16.msra.mxu0 0
      %924 = vmatprep.mubr.bf16.mxu0 0
      %925 = vmatmul.mubr.bf16.gmra.mrb[0].mxu0 %v886
      %v926 = vpop.f32.mrb[0].mxu0
      %v927 = vadd.f32 0.0, %v926
      %v928 = vpop.f32.mrb[0].mxu0
      %v929 = vpop.f32.mrb[0].mxu0
      %v930 = vpop.f32.mrb[0].mxu0
      %931 = vdwg.mxu0
      %vm932 = vcmp.lt.s32.totalorder %v312, 0
      %v933 = vsub.s32 0, %v312
      %v934 = vsel %vm932, %v933, %v312
      %v935 = vshrl.u32 %v934, 1
      %v936 = vand.u32 %v934, 1
      %v937 = vsub.s32 0, %v936
      %v938 = vsel %vm932, %v937, %v936
      %vm939 = vcmp.ne.s32.totalorder %v938, 0
      %vm940 = vcmp.lt.s32.totalorder %v938, 0
      %vm941 = vmand %vm940, %vm939
      %v942 = vadd.s32 %v938, 2
      %v943 = vsel %vm941, %v942, %v938
      %vm944 = vcmp.eq.s32.totalorder %v943, 0
      %s945 = scalar_lea.vmem %s7, 40
      %v946 = vld [vmem:[%s945] sm:$0xff]
      %v947 = vsel %vm944, 1, 0
      %vm948 = vcmp.eq.s32.totalorder %v947, 1
      %v949 = vsel %vm948, %v927, 0.0
      %950 = vadd.xlane.f32.xlu0 %v949
      %v951 = vpop.xlane.xlu0 %950
      %v952 = vmul.f32 %v951, 0.015625
      %v953 = vsub.f32 %v927, %v952
      %v954 = vsel %vm948, %v953, 0.0
      %v955 = vmul.f32 %v954, %v954
      %956 = vadd.xlane.f32.xlu0 %v955
      %v957 = vpop.xlane.xlu0 %956
      %v958 = vmul.f32 %v957, 0.015625
      %v959 = vadd.f32 %v958, 1e-05
      %v960 = vrsqrt.pop %v959
      %v961 = vmul.f32 %v953, %v960
      %963 = vset.pattern.permute.xlu0 0
      %964 = vperm.xlu0 %963, %v946
      %v965 = vpop.permute.xlu0 %964
      %v967 = vmul.f32 %v961, %v965
      %968 = vset.pattern.permute.xlu0 1
      %969 = vperm.xlu0 %968, %v946
      %v970 = vpop.permute.xlu0 %969
      %v972 = vadd.f32 %v967, %v970
      %vm973 = vcmp.ge.f32.partialorder %v972, 0.0
      %974 = vset.pattern.permute.xlu0 2
      %975 = vperm.xlu0 %974, %v946
      %v976 = vpop.permute.xlu0 %975
      %v978 = vmul.f32 %v976, %v972
      %v979 = vsel %vm973, %v972, %v978
      %980 = vst [vmem:[%s297] sm:$0xff] %v979
      %p981 = scmp.lt.s32.totalorder %s19, 1
      %s982 = scalar_select %p981, %s19, 1
      %s983 = smul.addr %s982, 8
      %s984 = scalar_lea.vmem %s8, %s983
      // Predicated region
      $region53: #{dense_encoder_forward.1} parent=51 // pred_check
        %p985 = pneg %p210
      $region54: #{dense_encoder_forward.1} parent=51 // pred_check_branch
        %987 = sbr.rel (%p985) target = $region56
      $region55: #{dense_encoder_forward.1} parent=51 // pred_region
        _
      $region56: #{dense_encoder_forward.1} parent=51 // pred_fallthru
        _
    $region52: #{dense_encoder_forward.1} parent=5 // pred_fallthru
      _
    %p988 = scmp.le.s32.totalorder 2, %s14
    // Predicated region
    $region57: #{dense_encoder_forward.1} parent=5 // pred_check
      %p989 = pneg %p988
    $region58: #{dense_encoder_forward.1} parent=5 // pred_check_branch
      %991 = sbr.rel (%p989) target = $region60
    $region59: #{dense_encoder_forward.1} parent=5 // pred_region
      %s992 = ssub.s32 %s14, 2
      // Predicated region
      $region61: #{dense_encoder_forward.1} parent=59 // pred_check
        %p993 = pneg %p216
      $region62: #{dense_encoder_forward.1} parent=59 // pred_check_branch
        %995 = sbr.rel (%p993) target = $region64
      $region63: #{dense_encoder_forward.1} parent=59 // pred_region
        %p996 = scmp.lt.s32.totalorder %s20, 1
        %s997 = scalar_select %p996, %s20, 1
        %s998 = smul.addr %s997, 8
        %s999 = scalar_lea.vmem %s8, %s998
      $region64: #{dense_encoder_forward.1} parent=59 // pred_fallthru
        _
    $region60: #{dense_encoder_forward.1} parent=5 // pred_fallthru
      _
  $region6: #{dense_encoder_forward.1} parent=0 // loop_footer
    %s18 = sadd.s32 1, %s14
  $region7: #{dense_encoder_forward.1} parent=0 // loop_footer_branch
    %13 = sbr.rel target = $region3
  $region8: #{dense_encoder_forward.1} parent=0 // loop_exit
    _

</llo_original>
